<compile_context>
chip_gen: v5e
topology: v5e:2x2
jax: 0.10.0
libtpu: 0.0.40
codegen_flags: <defaults>
</compile_context>

<pallas_src>
from functools import partial

import jax
import jax.numpy as jnp
from jax.experimental import pallas as pl
from jax.experimental.pallas import tpu as pltpu


def _mff_encoder_kernel(mask_ref, x_ref, w1_ref, s1_ref, b1_ref, wf_ref, w23b_ref,
                        w3a_ref, w3b_ref, s3_ref, b3_ref, out_ref, x3_ref, *, W):
    """Activations are (C, N*H*W): channels on sublanes, flat batch+spatial on lanes."""
    L = x_ref.shape[1]                 # N*H*W lanes
    Cout = out_ref.shape[0]

    taps = [(dy, dx) for dy in (-1, 0, 1) for dx in (-1, 0, 1)]
    # Hoist the per-tap border masks once; reused by all three im2col calls
    # (JAX does not CSE the repeated slices / broadcasts).
    msk = [mask_ref[t:t + 1, :] for t in range(9)]

    def im2col_bf16(a):
        # a: (C, L) f32 -> (9*C, L) bf16. Lane rolls ride the otherwise idle XLU; the masks zero
        # every pixel whose tap wrapped across an image border (zero-padding semantics), including
        # wraps into the neighbouring image of the folded batch.
        parts = []
        for t, (dy, dx) in enumerate(taps):
            off = dy * W + dx
            if off == 0:
                parts.append(a)
            else:
                parts.append(pltpu.roll(a, shift=(-off) % L, axis=1) * msk[t])
        return jnp.concatenate(parts, axis=0).astype(jnp.bfloat16)

    relu = lambda v: jnp.maximum(v, 0.0)
    dotf = lambda a, b: jnp.dot(a, b, preferred_element_type=jnp.float32)

    # conv1: 3x3 conv + eval-mode BN (scale+shift) + ReLU
    x1 = relu(s1_ref[...] * dotf(w1_ref[...], im2col_bf16(x_ref[...])) + b1_ref[...])  # (Cout, L)

    # conv2_1 (1x1) | conv2_2 (3x3) | conv2_3 first 3x3, fused: one shared im2col, one matmul.
    f = relu(dotf(wf_ref[...], im2col_bf16(x1)))            # (3*Cout, L) = [x21; x22; t23]

    # conv2_3 second 3x3 + ReLU
    x23 = relu(dotf(w23b_ref[...], im2col_bf16(f[2 * Cout:])))          # (Cout, L)

    # conv3: 1x1 over concat([x21, x22, x23]) (never materialized) + eval-mode BN + ReLU
    x3 = relu(s3_ref[...] * (dotf(w3a_ref[...], f[:2 * Cout].astype(jnp.bfloat16))
                             + dotf(w3b_ref[...], x23.astype(jnp.bfloat16)))
              + b3_ref[...])                                            # (Cout, L)

    x3_ref[...] = x3
    out_ref[...] = x3 + x1


@jax.jit
def mff_encoder(x_cnhw, p):
    """x_cnhw: (Cin, N, H, W) float32 — canonical channels-on-sublanes layout.
    Returns (out, x3), each (Cout, N, H, W) float32."""
    Cin, N, H, W = x_cnhw.shape
    Cout = p["w21"].shape[1]
    L = N * H * W

    # ---- weights in kernel layout; MXU operands pre-cast to bf16 ----
    def t3x3(w):  # HWIO (3,3,ci,co) -> (co, 9*ci), row-major over (dy, dx, ci)
        return jnp.transpose(w, (3, 0, 1, 2)).reshape(w.shape[-1], -1)

    w1k = t3x3(p["w1"]).astype(jnp.bfloat16)                                  # (Cout, 9*Cin)
    # conv2_1's 1x1 weight becomes center-tap-only rows of the fused 3x3 weight.
    w21_rows = jnp.zeros((Cout, 9, Cout), jnp.float32).at[:, 4, :].set(p["w21"].T)
    wfk = jnp.concatenate([w21_rows.reshape(Cout, 9 * Cout),
                           t3x3(p["w22"]), t3x3(p["w23a"])],
                          axis=0).astype(jnp.bfloat16)                        # (3*Cout, 9*Cout)
    w23bk = t3x3(p["w23b"]).astype(jnp.bfloat16)                              # (Cout, 9*Cout)
    w3T = p["w3"].T                                                           # (Cout, 3*Cout)
    w3ak = w3T[:, :2 * Cout].astype(jnp.bfloat16)                             # acts on [x21; x22]
    w3bk = w3T[:, 2 * Cout:].astype(jnp.bfloat16)                             # acts on x23
    col = lambda v: v.reshape(Cout, 1).astype(jnp.float32)
    s1k, b1k, s3k, b3k = col(p["s1"]), col(p["b1"]), col(p["s3"]), col(p["b3"])

    # ---- border-validity masks for the 9 taps, tiled per image along the lane axis ----
    yy, xx = jnp.arange(H), jnp.arange(W)
    mlist = []
    for dy in (-1, 0, 1):
        for dx in (-1, 0, 1):
            ok = (((yy + dy >= 0) & (yy + dy < H))[:, None]
                  & ((xx + dx >= 0) & (xx + dx < W))[None, :])
            mlist.append(ok.astype(jnp.float32).reshape(H * W))
    masks = jnp.tile(jnp.stack(mlist, axis=0), (1, N))                        # (9, L)

    xk = x_cnhw.reshape(Cin, L)                                               # free (no transpose)

    full = lambda arr: pl.BlockSpec(arr.shape, lambda i: (0, 0))              # all operands are 2-D
    flops = 2 * L * (9 * Cin * Cout + 39 * Cout * Cout)
    bytes_accessed = ((9 * L + Cin * L + 2 * Cout * L + 4 * Cout) * 4
                      + 2 * (Cout * 9 * Cin + 3 * Cout * 9 * Cout
                             + Cout * 9 * Cout + Cout * 3 * Cout))

    inputs = (masks, xk, w1k, s1k, b1k, wfk, w23bk, w3ak, w3bk, s3k, b3k)
    out, x3 = pl.pallas_call(
        partial(_mff_encoder_kernel, W=W),
        out_shape=(jax.ShapeDtypeStruct((Cout, L), jnp.float32),
                   jax.ShapeDtypeStruct((Cout, L), jnp.float32)),
        grid=(1,),
        in_specs=[full(a) for a in inputs],
        out_specs=(pl.BlockSpec((Cout, L), lambda i: (0, 0)),
                   pl.BlockSpec((Cout, L), lambda i: (0, 0))),
        compiler_params=pltpu.CompilerParams(
            dimension_semantics=("arbitrary",),
            vmem_limit_bytes=32 * 1024 * 1024),
        cost_estimate=pl.CostEstimate(flops=flops, transcendentals=0,
                                      bytes_accessed=bytes_accessed),
    )(*inputs)
    return out.reshape(Cout, N, H, W), x3.reshape(Cout, N, H, W)


def ref_forward(x, p, dot_dtype=jnp.float32):
    """Pure-JAX NHWC reference of the PyTorch forward (eval-mode BatchNorm).
    dot_dtype controls the conv/matmul operand dtype (accumulation stays f32);
    dot_dtype=bfloat16 mirrors the kernel's MXU numerics."""
    prec = jax.lax.Precision.HIGHEST if dot_dtype == jnp.float32 else None
    c = lambda a: a.astype(dot_dtype)

    def conv3x3(inp, w):
        return jax.lax.conv_general_dilated(
            c(inp), c(w), window_strides=(1, 1), padding=[(1, 1), (1, 1)],
            dimension_numbers=("NHWC", "HWIO", "NHWC"),
            precision=prec, preferred_element_type=jnp.float32)

    def conv1x1(inp, w):
        return jnp.einsum("nhwc,co->nhwo", c(inp), c(w),
                          precision=prec, preferred_element_type=jnp.float32)

    x1 = jnp.maximum(conv3x3(x, p["w1"]) * p["s1"] + p["b1"], 0.0)
    x21 = jnp.maximum(conv1x1(x1, p["w21"]), 0.0)
    x22 = jnp.maximum(conv3x3(x1, p["w22"]), 0.0)
    t = jnp.maximum(conv3x3(x1, p["w23a"]), 0.0)
    x23 = jnp.maximum(conv3x3(t, p["w23b"]), 0.0)
    x2 = jnp.concatenate([x21, x22, x23], axis=-1)
    x3 = jnp.maximum(conv1x1(x2, p["w3"]) * p["s3"] + p["b3"], 0.0)
    return x3 + x1, x3


def make_params(key, Cin, Cout):
    ks = jax.random.split(key, 14)
    nrm = lambda k, shape, s=0.1: s * jax.random.normal(k, shape, jnp.float32)
    eps = 1e-5

    w1 = nrm(ks[0], (3, 3, Cin, Cout))
    w21 = nrm(ks[1], (Cout, Cout))
    w22 = nrm(ks[2], (3, 3, Cout, Cout))
    w23a = nrm(ks[3], (3, 3, Cout, Cout))
    w23b = nrm(ks[4], (3, 3, Cout, Cout))
    w3 = nrm(ks[5], (3 * Cout, Cout))

    # BN1 (after conv1), eval mode -> per-channel scale/shift
    g1 = 1.0 + nrm(ks[6], (Cout,)); be1 = nrm(ks[7], (Cout,))
    m1 = nrm(ks[8], (Cout,)); v1 = 1.0 + jnp.abs(nrm(ks[9], (Cout,)))
    s1 = g1 / jnp.sqrt(v1 + eps); b1 = be1 - m1 * s1

    # BN3 (after conv3)
    g3 = 1.0 + nrm(ks[10], (Cout,)); be3 = nrm(ks[11], (Cout,))
    m3 = nrm(ks[12], (Cout,)); v3 = 1.0 + jnp.abs(nrm(ks[13], (Cout,)))
    s3 = g3 / jnp.sqrt(v3 + eps); b3 = be3 - m3 * s3

    return dict(w1=w1, w21=w21, w22=w22, w23a=w23a, w23b=w23b, w3=w3,
                s1=s1, b1=b1, s3=s3, b3=b3)


if __name__ == "__main__":
    N, H, W = 2, 16, 16
    Cin, Cout = 8, 16   # small shapes; Cin=8 keeps the sublane axis 8-aligned

    key = jax.random.PRNGKey(0)
    kx, kp = jax.random.split(key)
    x_nhwc = jax.random.normal(kx, (N, H, W, Cin), jnp.float32)
    params = make_params(kp, Cin, Cout)

    # Canonical kernel layout is (C, N, H, W); the single transpose here is test plumbing.
    # In a real pipeline this layout is persistent between modules (no per-layer transposes).
    x_k = jnp.transpose(x_nhwc, (3, 0, 1, 2))

    out_k, x3_k = mff_encoder(x_k, params)
    out_k, x3_k = jax.block_until_ready((out_k, x3_k))
    assert out_k.shape == (Cout, N, H, W) and x3_k.shape == (Cout, N, H, W)

    to_k = lambda a: jnp.transpose(a, (3, 0, 1, 2))    # NHWC -> (C, N, H, W)

    # (1) Tight check against a reference using the kernel's matmul numerics
    #     (bf16 operands, f32 accumulation): catches any layout/indexing/fusion bug.
    rb_out, rb_x3 = ref_forward(x_nhwc, params, dot_dtype=jnp.bfloat16)
    e_out = float(jnp.max(jnp.abs(out_k - to_k(rb_out))))
    e_x3 = float(jnp.max(jnp.abs(x3_k - to_k(rb_x3))))
    assert e_out < 2e-2 and e_x3 < 2e-2, \
        f"mismatch vs bf16-operand reference: out={e_out} x3={e_x3}"

    # (2) Loose sanity check against the full-f32 HIGHEST-precision reference:
    #     the only expected deviation is bf16 operand rounding on the MXU.
    rf_out, rf_x3 = ref_forward(x_nhwc, params, dot_dtype=jnp.float32)
    e_out32 = float(jnp.max(jnp.abs(out_k - to_k(rf_out))))
    e_x332 = float(jnp.max(jnp.abs(x3_k - to_k(rf_x3))))
    assert e_out32 < 2e-1 and e_x332 < 2e-1, \
        f"mismatch vs f32 reference: out={e_out32} x3={e_x332}"

    print("KERNEL_OK")
</pallas_src>

<mosaic_0001>
module attributes {stable_mosaic.version = 11 : i64} {
  func.func @_mff_encoder_kernel(%arg0: i32, %arg1: memref<9x512xf32, #tpu.memory_space<vmem>>, %arg2: memref<8x512xf32, #tpu.memory_space<vmem>>, %arg3: memref<16x72xbf16, #tpu.memory_space<vmem>>, %arg4: memref<16x1xf32, #tpu.memory_space<vmem>>, %arg5: memref<16x1xf32, #tpu.memory_space<vmem>>, %arg6: memref<48x144xbf16, #tpu.memory_space<vmem>>, %arg7: memref<16x144xbf16, #tpu.memory_space<vmem>>, %arg8: memref<16x32xbf16, #tpu.memory_space<vmem>>, %arg9: memref<16x16xbf16, #tpu.memory_space<vmem>>, %arg10: memref<16x1xf32, #tpu.memory_space<vmem>>, %arg11: memref<16x1xf32, #tpu.memory_space<vmem>>, %arg12: memref<16x512xf32, #tpu.memory_space<vmem>>, %arg13: memref<16x512xf32, #tpu.memory_space<vmem>>) attributes {dimension_semantics = [#tpu.dimension_semantics<arbitrary>], iteration_bounds = array<i64: 1>, scalar_prefetch = 0 : i64, scratch_operands = 0 : i64, tpu.core_type = #tpu.core_type<tc>, window_params = [{pipeline_mode = #tpu.pipeline_mode<synchronous>, transform_indices = @transform_0, window_bounds = array<i64: 9, 512>}, {pipeline_mode = #tpu.pipeline_mode<synchronous>, transform_indices = @transform_1, window_bounds = array<i64: 8, 512>}, {pipeline_mode = #tpu.pipeline_mode<synchronous>, transform_indices = @transform_2, window_bounds = array<i64: 16, 72>}, {pipeline_mode = #tpu.pipeline_mode<synchronous>, transform_indices = @transform_3, window_bounds = array<i64: 16, 1>}, {pipeline_mode = #tpu.pipeline_mode<synchronous>, transform_indices = @transform_4, window_bounds = array<i64: 16, 1>}, {pipeline_mode = #tpu.pipeline_mode<synchronous>, transform_indices = @transform_5, window_bounds = array<i64: 48, 144>}, {pipeline_mode = #tpu.pipeline_mode<synchronous>, transform_indices = @transform_6, window_bounds = array<i64: 16, 144>}, {pipeline_mode = #tpu.pipeline_mode<synchronous>, transform_indices = @transform_7, window_bounds = array<i64: 16, 32>}, {pipeline_mode = #tpu.pipeline_mode<synchronous>, transform_indices = @transform_8, window_bounds = array<i64: 16, 16>}, {pipeline_mode = #tpu.pipeline_mode<synchronous>, transform_indices = @transform_9, window_bounds = array<i64: 16, 1>}, {pipeline_mode = #tpu.pipeline_mode<synchronous>, transform_indices = @transform_10, window_bounds = array<i64: 16, 1>}, {pipeline_mode = #tpu.pipeline_mode<synchronous>, transform_indices = @transform_11, window_bounds = array<i64: 16, 512>}, {pipeline_mode = #tpu.pipeline_mode<synchronous>, transform_indices = @transform_12, window_bounds = array<i64: 16, 512>}]} {
    %c0 = arith.constant 0 : index
    %c0_0 = arith.constant 0 : index
    %0 = vector.load %arg1[%c0, %c0_0] : memref<9x512xf32, #tpu.memory_space<vmem>>, vector<1x512xf32>
    %c1 = arith.constant 1 : index
    %c0_1 = arith.constant 0 : index
    %1 = vector.load %arg1[%c1, %c0_1] : memref<9x512xf32, #tpu.memory_space<vmem>>, vector<1x512xf32>
    %c2 = arith.constant 2 : index
    %c0_2 = arith.constant 0 : index
    %2 = vector.load %arg1[%c2, %c0_2] : memref<9x512xf32, #tpu.memory_space<vmem>>, vector<1x512xf32>
    %c3 = arith.constant 3 : index
    %c0_3 = arith.constant 0 : index
    %3 = vector.load %arg1[%c3, %c0_3] : memref<9x512xf32, #tpu.memory_space<vmem>>, vector<1x512xf32>
    %c5 = arith.constant 5 : index
    %c0_4 = arith.constant 0 : index
    %4 = vector.load %arg1[%c5, %c0_4] : memref<9x512xf32, #tpu.memory_space<vmem>>, vector<1x512xf32>
    %c6 = arith.constant 6 : index
    %c0_5 = arith.constant 0 : index
    %5 = vector.load %arg1[%c6, %c0_5] : memref<9x512xf32, #tpu.memory_space<vmem>>, vector<1x512xf32>
    %c7 = arith.constant 7 : index
    %c0_6 = arith.constant 0 : index
    %6 = vector.load %arg1[%c7, %c0_6] : memref<9x512xf32, #tpu.memory_space<vmem>>, vector<1x512xf32>
    %c8 = arith.constant 8 : index
    %c0_7 = arith.constant 0 : index
    %7 = vector.load %arg1[%c8, %c0_7] : memref<9x512xf32, #tpu.memory_space<vmem>>, vector<1x512xf32>
    %c0_8 = arith.constant 0 : index
    %c0_9 = arith.constant 0 : index
    %8 = vector.load %arg4[%c0_8, %c0_9] : memref<16x1xf32, #tpu.memory_space<vmem>>, vector<16x1xf32>
    %c0_10 = arith.constant 0 : index
    %c0_11 = arith.constant 0 : index
    %9 = vector.load %arg3[%c0_10, %c0_11] : memref<16x72xbf16, #tpu.memory_space<vmem>>, vector<16x72xbf16>
    %c0_12 = arith.constant 0 : index
    %c0_13 = arith.constant 0 : index
    %10 = vector.load %arg2[%c0_12, %c0_13] : memref<8x512xf32, #tpu.memory_space<vmem>>, vector<8x512xf32>
    %c17_i32 = arith.constant 17 : i32
    %11 = tpu.dynamic_rotate %10 by %c17_i32 dim 1 : vector<8x512xf32>, i32 -> vector<8x512xf32>
    %12 = vector.broadcast %0 : vector<1x512xf32> to vector<8x512xf32>
    %13 = arith.mulf %11, %12 : vector<8x512xf32>
    %c16_i32 = arith.constant 16 : i32
    %14 = tpu.dynamic_rotate %10 by %c16_i32 dim 1 : vector<8x512xf32>, i32 -> vector<8x512xf32>
    %15 = vector.broadcast %1 : vector<1x512xf32> to vector<8x512xf32>
    %16 = arith.mulf %14, %15 : vector<8x512xf32>
    %c15_i32 = arith.constant 15 : i32
    %17 = tpu.dynamic_rotate %10 by %c15_i32 dim 1 : vector<8x512xf32>, i32 -> vector<8x512xf32>
    %18 = vector.broadcast %2 : vector<1x512xf32> to vector<8x512xf32>
    %19 = arith.mulf %17, %18 : vector<8x512xf32>
    %c1_i32 = arith.constant 1 : i32
    %20 = tpu.dynamic_rotate %10 by %c1_i32 dim 1 : vector<8x512xf32>, i32 -> vector<8x512xf32>
    %21 = vector.broadcast %3 : vector<1x512xf32> to vector<8x512xf32>
    %22 = arith.mulf %20, %21 : vector<8x512xf32>
    %c511_i32 = arith.constant 511 : i32
    %23 = tpu.dynamic_rotate %10 by %c511_i32 dim 1 : vector<8x512xf32>, i32 -> vector<8x512xf32>
    %24 = vector.broadcast %4 : vector<1x512xf32> to vector<8x512xf32>
    %25 = arith.mulf %23, %24 : vector<8x512xf32>
    %c497_i32 = arith.constant 497 : i32
    %26 = tpu.dynamic_rotate %10 by %c497_i32 dim 1 : vector<8x512xf32>, i32 -> vector<8x512xf32>
    %27 = vector.broadcast %5 : vector<1x512xf32> to vector<8x512xf32>
    %28 = arith.mulf %26, %27 : vector<8x512xf32>
    %c496_i32 = arith.constant 496 : i32
    %29 = tpu.dynamic_rotate %10 by %c496_i32 dim 1 : vector<8x512xf32>, i32 -> vector<8x512xf32>
    %30 = vector.broadcast %6 : vector<1x512xf32> to vector<8x512xf32>
    %31 = arith.mulf %29, %30 : vector<8x512xf32>
    %c495_i32 = arith.constant 495 : i32
    %32 = tpu.dynamic_rotate %10 by %c495_i32 dim 1 : vector<8x512xf32>, i32 -> vector<8x512xf32>
    %33 = vector.broadcast %7 : vector<1x512xf32> to vector<8x512xf32>
    %34 = arith.mulf %32, %33 : vector<8x512xf32>
    %35 = tpu.concatenate %13, %16, %19, %22, %10, %25, %28, %31, %34 in 0 : vector<8x512xf32>, vector<8x512xf32>, vector<8x512xf32>, vector<8x512xf32>, vector<8x512xf32>, vector<8x512xf32>, vector<8x512xf32>, vector<8x512xf32>, vector<8x512xf32> -> vector<72x512xf32>
    %36 = arith.truncf %35 : vector<72x512xf32> to vector<72x512xbf16>
    %cst = arith.constant dense<0.000000e+00> : vector<16x512xf32>
    %37 = tpu.matmul %9, %36, %cst {dimension_numbers = #tpu.dot_dimension_numbers<[1], [0], [0], [1], [0, 0, 1, 1], [], []>} : vector<16x72xbf16>, vector<72x512xbf16>, vector<16x512xf32> -> vector<16x512xf32>
    %38 = vector.broadcast %8 : vector<16x1xf32> to vector<16x512xf32>
    %39 = arith.mulf %38, %37 : vector<16x512xf32>
    %c0_14 = arith.constant 0 : index
    %c0_15 = arith.constant 0 : index
    %40 = vector.load %arg5[%c0_14, %c0_15] : memref<16x1xf32, #tpu.memory_space<vmem>>, vector<16x1xf32>
    %41 = vector.broadcast %40 : vector<16x1xf32> to vector<16x512xf32>
    %42 = arith.addf %39, %41 : vector<16x512xf32>
    %cst_16 = arith.constant 0.000000e+00 : f32
    %43 = vector.broadcast %cst_16 : f32 to vector<16x512xf32>
    %44 = arith.maximumf %42, %43 : vector<16x512xf32>
    %c0_17 = arith.constant 0 : index
    %c0_18 = arith.constant 0 : index
    %45 = vector.load %arg6[%c0_17, %c0_18] : memref<48x144xbf16, #tpu.memory_space<vmem>>, vector<48x144xbf16>
    %c17_i32_19 = arith.constant 17 : i32
    %46 = tpu.dynamic_rotate %44 by %c17_i32_19 dim 1 : vector<16x512xf32>, i32 -> vector<16x512xf32>
    %47 = vector.broadcast %0 : vector<1x512xf32> to vector<16x512xf32>
    %48 = arith.mulf %46, %47 : vector<16x512xf32>
    %c16_i32_20 = arith.constant 16 : i32
    %49 = tpu.dynamic_rotate %44 by %c16_i32_20 dim 1 : vector<16x512xf32>, i32 -> vector<16x512xf32>
    %50 = vector.broadcast %1 : vector<1x512xf32> to vector<16x512xf32>
    %51 = arith.mulf %49, %50 : vector<16x512xf32>
    %c15_i32_21 = arith.constant 15 : i32
    %52 = tpu.dynamic_rotate %44 by %c15_i32_21 dim 1 : vector<16x512xf32>, i32 -> vector<16x512xf32>
    %53 = vector.broadcast %2 : vector<1x512xf32> to vector<16x512xf32>
    %54 = arith.mulf %52, %53 : vector<16x512xf32>
    %c1_i32_22 = arith.constant 1 : i32
    %55 = tpu.dynamic_rotate %44 by %c1_i32_22 dim 1 : vector<16x512xf32>, i32 -> vector<16x512xf32>
    %56 = vector.broadcast %3 : vector<1x512xf32> to vector<16x512xf32>
    %57 = arith.mulf %55, %56 : vector<16x512xf32>
    %c511_i32_23 = arith.constant 511 : i32
    %58 = tpu.dynamic_rotate %44 by %c511_i32_23 dim 1 : vector<16x512xf32>, i32 -> vector<16x512xf32>
    %59 = vector.broadcast %4 : vector<1x512xf32> to vector<16x512xf32>
    %60 = arith.mulf %58, %59 : vector<16x512xf32>
    %c497_i32_24 = arith.constant 497 : i32
    %61 = tpu.dynamic_rotate %44 by %c497_i32_24 dim 1 : vector<16x512xf32>, i32 -> vector<16x512xf32>
    %62 = vector.broadcast %5 : vector<1x512xf32> to vector<16x512xf32>
    %63 = arith.mulf %61, %62 : vector<16x512xf32>
    %c496_i32_25 = arith.constant 496 : i32
    %64 = tpu.dynamic_rotate %44 by %c496_i32_25 dim 1 : vector<16x512xf32>, i32 -> vector<16x512xf32>
    %65 = vector.broadcast %6 : vector<1x512xf32> to vector<16x512xf32>
    %66 = arith.mulf %64, %65 : vector<16x512xf32>
    %c495_i32_26 = arith.constant 495 : i32
    %67 = tpu.dynamic_rotate %44 by %c495_i32_26 dim 1 : vector<16x512xf32>, i32 -> vector<16x512xf32>
    %68 = vector.broadcast %7 : vector<1x512xf32> to vector<16x512xf32>
    %69 = arith.mulf %67, %68 : vector<16x512xf32>
    %70 = tpu.concatenate %48, %51, %54, %57, %44, %60, %63, %66, %69 in 0 : vector<16x512xf32>, vector<16x512xf32>, vector<16x512xf32>, vector<16x512xf32>, vector<16x512xf32>, vector<16x512xf32>, vector<16x512xf32>, vector<16x512xf32>, vector<16x512xf32> -> vector<144x512xf32>
    %71 = arith.truncf %70 : vector<144x512xf32> to vector<144x512xbf16>
    %cst_27 = arith.constant dense<0.000000e+00> : vector<48x512xf32>
    %72 = tpu.matmul %45, %71, %cst_27 {dimension_numbers = #tpu.dot_dimension_numbers<[1], [0], [0], [1], [0, 0, 1, 1], [], []>} : vector<48x144xbf16>, vector<144x512xbf16>, vector<48x512xf32> -> vector<48x512xf32>
    %cst_28 = arith.constant 0.000000e+00 : f32
    %73 = vector.broadcast %cst_28 : f32 to vector<48x512xf32>
    %74 = arith.maximumf %72, %73 : vector<48x512xf32>
    %c0_29 = arith.constant 0 : index
    %c0_30 = arith.constant 0 : index
    %75 = vector.load %arg7[%c0_29, %c0_30] : memref<16x144xbf16, #tpu.memory_space<vmem>>, vector<16x144xbf16>
    %76 = vector.extract_strided_slice %74 {offsets = [32, 0], sizes = [16, 512], strides = [1, 1]} : vector<48x512xf32> to vector<16x512xf32>
    %c17_i32_31 = arith.constant 17 : i32
    %77 = tpu.dynamic_rotate %76 by %c17_i32_31 dim 1 : vector<16x512xf32>, i32 -> vector<16x512xf32>
    %78 = vector.broadcast %0 : vector<1x512xf32> to vector<16x512xf32>
    %79 = arith.mulf %77, %78 : vector<16x512xf32>
    %c16_i32_32 = arith.constant 16 : i32
    %80 = tpu.dynamic_rotate %76 by %c16_i32_32 dim 1 : vector<16x512xf32>, i32 -> vector<16x512xf32>
    %81 = vector.broadcast %1 : vector<1x512xf32> to vector<16x512xf32>
    %82 = arith.mulf %80, %81 : vector<16x512xf32>
    %c15_i32_33 = arith.constant 15 : i32
    %83 = tpu.dynamic_rotate %76 by %c15_i32_33 dim 1 : vector<16x512xf32>, i32 -> vector<16x512xf32>
    %84 = vector.broadcast %2 : vector<1x512xf32> to vector<16x512xf32>
    %85 = arith.mulf %83, %84 : vector<16x512xf32>
    %c1_i32_34 = arith.constant 1 : i32
    %86 = tpu.dynamic_rotate %76 by %c1_i32_34 dim 1 : vector<16x512xf32>, i32 -> vector<16x512xf32>
    %87 = vector.broadcast %3 : vector<1x512xf32> to vector<16x512xf32>
    %88 = arith.mulf %86, %87 : vector<16x512xf32>
    %c511_i32_35 = arith.constant 511 : i32
    %89 = tpu.dynamic_rotate %76 by %c511_i32_35 dim 1 : vector<16x512xf32>, i32 -> vector<16x512xf32>
    %90 = vector.broadcast %4 : vector<1x512xf32> to vector<16x512xf32>
    %91 = arith.mulf %89, %90 : vector<16x512xf32>
    %c497_i32_36 = arith.constant 497 : i32
    %92 = tpu.dynamic_rotate %76 by %c497_i32_36 dim 1 : vector<16x512xf32>, i32 -> vector<16x512xf32>
    %93 = vector.broadcast %5 : vector<1x512xf32> to vector<16x512xf32>
    %94 = arith.mulf %92, %93 : vector<16x512xf32>
    %c496_i32_37 = arith.constant 496 : i32
    %95 = tpu.dynamic_rotate %76 by %c496_i32_37 dim 1 : vector<16x512xf32>, i32 -> vector<16x512xf32>
    %96 = vector.broadcast %6 : vector<1x512xf32> to vector<16x512xf32>
    %97 = arith.mulf %95, %96 : vector<16x512xf32>
    %c495_i32_38 = arith.constant 495 : i32
    %98 = tpu.dynamic_rotate %76 by %c495_i32_38 dim 1 : vector<16x512xf32>, i32 -> vector<16x512xf32>
    %99 = vector.broadcast %7 : vector<1x512xf32> to vector<16x512xf32>
    %100 = arith.mulf %98, %99 : vector<16x512xf32>
    %101 = tpu.concatenate %79, %82, %85, %88, %76, %91, %94, %97, %100 in 0 : vector<16x512xf32>, vector<16x512xf32>, vector<16x512xf32>, vector<16x512xf32>, vector<16x512xf32>, vector<16x512xf32>, vector<16x512xf32>, vector<16x512xf32>, vector<16x512xf32> -> vector<144x512xf32>
    %102 = arith.truncf %101 : vector<144x512xf32> to vector<144x512xbf16>
    %cst_39 = arith.constant dense<0.000000e+00> : vector<16x512xf32>
    %103 = tpu.matmul %75, %102, %cst_39 {dimension_numbers = #tpu.dot_dimension_numbers<[1], [0], [0], [1], [0, 0, 1, 1], [], []>} : vector<16x144xbf16>, vector<144x512xbf16>, vector<16x512xf32> -> vector<16x512xf32>
    %cst_40 = arith.constant 0.000000e+00 : f32
    %104 = vector.broadcast %cst_40 : f32 to vector<16x512xf32>
    %105 = arith.maximumf %103, %104 : vector<16x512xf32>
    %c0_41 = arith.constant 0 : index
    %c0_42 = arith.constant 0 : index
    %106 = vector.load %arg10[%c0_41, %c0_42] : memref<16x1xf32, #tpu.memory_space<vmem>>, vector<16x1xf32>
    %c0_43 = arith.constant 0 : index
    %c0_44 = arith.constant 0 : index
    %107 = vector.load %arg8[%c0_43, %c0_44] : memref<16x32xbf16, #tpu.memory_space<vmem>>, vector<16x32xbf16>
    %108 = vector.extract_strided_slice %74 {offsets = [0, 0], sizes = [32, 512], strides = [1, 1]} : vector<48x512xf32> to vector<32x512xf32>
    %109 = arith.truncf %108 : vector<32x512xf32> to vector<32x512xbf16>
    %cst_45 = arith.constant dense<0.000000e+00> : vector<16x512xf32>
    %110 = tpu.matmul %107, %109, %cst_45 {dimension_numbers = #tpu.dot_dimension_numbers<[1], [0], [0], [1], [0, 0, 1, 1], [], []>} : vector<16x32xbf16>, vector<32x512xbf16>, vector<16x512xf32> -> vector<16x512xf32>
    %c0_46 = arith.constant 0 : index
    %c0_47 = arith.constant 0 : index
    %111 = vector.load %arg9[%c0_46, %c0_47] : memref<16x16xbf16, #tpu.memory_space<vmem>>, vector<16x16xbf16>
    %112 = arith.truncf %105 : vector<16x512xf32> to vector<16x512xbf16>
    %cst_48 = arith.constant dense<0.000000e+00> : vector<16x512xf32>
    %113 = tpu.matmul %111, %112, %cst_48 {dimension_numbers = #tpu.dot_dimension_numbers<[1], [0], [0], [1], [0, 0, 1, 1], [], []>} : vector<16x16xbf16>, vector<16x512xbf16>, vector<16x512xf32> -> vector<16x512xf32>
    %114 = arith.addf %110, %113 : vector<16x512xf32>
    %115 = vector.broadcast %106 : vector<16x1xf32> to vector<16x512xf32>
    %116 = arith.mulf %115, %114 : vector<16x512xf32>
    %c0_49 = arith.constant 0 : index
    %c0_50 = arith.constant 0 : index
    %117 = vector.load %arg11[%c0_49, %c0_50] : memref<16x1xf32, #tpu.memory_space<vmem>>, vector<16x1xf32>
    %118 = vector.broadcast %117 : vector<16x1xf32> to vector<16x512xf32>
    %119 = arith.addf %116, %118 : vector<16x512xf32>
    %cst_51 = arith.constant 0.000000e+00 : f32
    %120 = vector.broadcast %cst_51 : f32 to vector<16x512xf32>
    %121 = arith.maximumf %119, %120 : vector<16x512xf32>
    %c0_52 = arith.constant 0 : index
    %c0_53 = arith.constant 0 : index
    %122 = vector.load %arg13[%c0_52, %c0_53] : memref<16x512xf32, #tpu.memory_space<vmem>>, vector<16x512xf32>
    tpu.vector_store %arg13[%c0_52, %c0_53], %121 {strides = array<i32>} : memref<16x512xf32, #tpu.memory_space<vmem>>, vector<16x512xf32>,
    %123 = arith.addf %121, %44 : vector<16x512xf32>
    %c0_54 = arith.constant 0 : index
    %c0_55 = arith.constant 0 : index
    %124 = vector.load %arg12[%c0_54, %c0_55] : memref<16x512xf32, #tpu.memory_space<vmem>>, vector<16x512xf32>
    tpu.vector_store %arg12[%c0_54, %c0_55], %123 {strides = array<i32>} : memref<16x512xf32, #tpu.memory_space<vmem>>, vector<16x512xf32>,
    return
  }
  func.func @transform_0(%arg0: i32) -> (i32, i32) {
    %c0_i32 = arith.constant 0 : i32
    %c0_i32_0 = arith.constant 0 : i32
    %c0_i32_1 = arith.constant 0 : i32
    return %c0_i32, %c0_i32_0 : i32, i32
  }
  func.func @transform_1(%arg0: i32) -> (i32, i32) {
    %c0_i32 = arith.constant 0 : i32
    %c0_i32_0 = arith.constant 0 : i32
    %c0_i32_1 = arith.constant 0 : i32
    return %c0_i32, %c0_i32_0 : i32, i32
  }
  func.func @transform_2(%arg0: i32) -> (i32, i32) {
    %c0_i32 = arith.constant 0 : i32
    %c0_i32_0 = arith.constant 0 : i32
    %c0_i32_1 = arith.constant 0 : i32
    return %c0_i32, %c0_i32_0 : i32, i32
  }
  func.func @transform_3(%arg0: i32) -> (i32, i32) {
    %c0_i32 = arith.constant 0 : i32
    %c0_i32_0 = arith.constant 0 : i32
    %c0_i32_1 = arith.constant 0 : i32
    return %c0_i32, %c0_i32_0 : i32, i32
  }
  func.func @transform_4(%arg0: i32) -> (i32, i32) {
    %c0_i32 = arith.constant 0 : i32
    %c0_i32_0 = arith.constant 0 : i32
    %c0_i32_1 = arith.constant 0 : i32
    return %c0_i32, %c0_i32_0 : i32, i32
  }
  func.func @transform_5(%arg0: i32) -> (i32, i32) {
    %c0_i32 = arith.constant 0 : i32
    %c0_i32_0 = arith.constant 0 : i32
    %c0_i32_1 = arith.constant 0 : i32
    return %c0_i32, %c0_i32_0 : i32, i32
  }
  func.func @transform_6(%arg0: i32) -> (i32, i32) {
    %c0_i32 = arith.constant 0 : i32
    %c0_i32_0 = arith.constant 0 : i32
    %c0_i32_1 = arith.constant 0 : i32
    return %c0_i32, %c0_i32_0 : i32, i32
  }
  func.func @transform_7(%arg0: i32) -> (i32, i32) {
    %c0_i32 = arith.constant 0 : i32
    %c0_i32_0 = arith.constant 0 : i32
    %c0_i32_1 = arith.constant 0 : i32
    return %c0_i32, %c0_i32_0 : i32, i32
  }
  func.func @transform_8(%arg0: i32) -> (i32, i32) {
    %c0_i32 = arith.constant 0 : i32
    %c0_i32_0 = arith.constant 0 : i32
    %c0_i32_1 = arith.constant 0 : i32
    return %c0_i32, %c0_i32_0 : i32, i32
  }
  func.func @transform_9(%arg0: i32) -> (i32, i32) {
    %c0_i32 = arith.constant 0 : i32
    %c0_i32_0 = arith.constant 0 : i32
    %c0_i32_1 = arith.constant 0 : i32
    return %c0_i32, %c0_i32_0 : i32, i32
  }
  func.func @transform_10(%arg0: i32) -> (i32, i32) {
    %c0_i32 = arith.constant 0 : i32
    %c0_i32_0 = arith.constant 0 : i32
    %c0_i32_1 = arith.constant 0 : i32
    return %c0_i32, %c0_i32_0 : i32, i32
  }
  func.func @transform_11(%arg0: i32) -> (i32, i32) {
    %c0_i32 = arith.constant 0 : i32
    %c0_i32_0 = arith.constant 0 : i32
    %c0_i32_1 = arith.constant 0 : i32
    return %c0_i32, %c0_i32_0 : i32, i32
  }
  func.func @transform_12(%arg0: i32) -> (i32, i32) {
    %c0_i32 = arith.constant 0 : i32
    %c0_i32_0 = arith.constant 0 : i32
    %c0_i32_1 = arith.constant 0 : i32
    return %c0_i32, %c0_i32_0 : i32, i32
  }
}

</mosaic_0001>

<llo_original>
// kernel: mff_encoder.1
$region0: #{mff_encoder.1}
  #allocation0 [shape = 'u32[]', space=smem, size = 0x4, offset = 0x4, fixed_abs, tag = 'smem constant byte address 0x4 - core index']
  #allocation1 [shape = 'u32[72,128]{1,0:T(1,128)}', space=vmem, size = 0x9000, scoped, tag = 'internal scratch']
  %s0 = inlined_call_operand.vmem [shape: f32[9,512], index: 0, kind: input, shape index: {}]
  %s1 = inlined_call_operand.vmem [shape: f32[8,512], index: 1, kind: input, shape index: {}]
  %s2 = inlined_call_operand.vmem [shape: bf16[16,72], index: 2, kind: input, shape index: {}]
  %s3 = inlined_call_operand.vmem [shape: f32[16,1], index: 3, kind: input, shape index: {}]
  %s4 = inlined_call_operand.vmem [shape: f32[16,1], index: 4, kind: input, shape index: {}]
  %s5 = inlined_call_operand.vmem [shape: bf16[48,144], index: 5, kind: input, shape index: {}]
  %s6 = inlined_call_operand.vmem [shape: bf16[16,144], index: 6, kind: input, shape index: {}]
  %s7 = inlined_call_operand.vmem [shape: bf16[16,32], index: 7, kind: input, shape index: {}]
  %s8 = inlined_call_operand.vmem [shape: bf16[16,16], index: 8, kind: input, shape index: {}]
  %s9 = inlined_call_operand.vmem [shape: f32[16,1], index: 9, kind: input, shape index: {}]
  %s10 = inlined_call_operand.vmem [shape: f32[16,1], index: 10, kind: input, shape index: {}]
  %s11 = inlined_call_operand.vmem [shape: f32[16,512], index: 11, kind: output, shape index: {0}]
  %s12 = inlined_call_operand.vmem [shape: f32[16,512], index: 12, kind: output, shape index: {1}]
  %13 = xla_tuple %s11, %s12
  %s14 = sld [smem:[#allocation0]]
  $region62: #{mff_encoder.1} parent=0
    _
  %s16 = ssub.s32 1, %s14
  %s17 = scalar_select 0, %s16, %s14
  // Predicated region
  $region2: #{mff_encoder.1} parent=0 // pred_check
    _
  $region3: #{mff_encoder.1} parent=0 // pred_check_branch
    %19 = sbr.rel (0) target = $region5
  $region4: #{mff_encoder.1} parent=0 // pred_region
    _
  $region5: #{mff_encoder.1} parent=0 // pred_fallthru
    _
  // Predicated region
  $region6: #{mff_encoder.1} parent=0 // pred_check
    _
  $region7: #{mff_encoder.1} parent=0 // pred_check_branch
    %21 = sbr.rel (0) target = $region9
  $region8: #{mff_encoder.1} parent=0 // pred_region
    _
  $region9: #{mff_encoder.1} parent=0 // pred_fallthru
    _
  // Predicated region
  $region10: #{mff_encoder.1} parent=0 // pred_check
    _
  $region11: #{mff_encoder.1} parent=0 // pred_check_branch
    %23 = sbr.rel (0) target = $region13
  $region12: #{mff_encoder.1} parent=0 // pred_region
    _
  $region13: #{mff_encoder.1} parent=0 // pred_fallthru
    _
  // Predicated region
  $region14: #{mff_encoder.1} parent=0 // pred_check
    _
  $region15: #{mff_encoder.1} parent=0 // pred_check_branch
    %25 = sbr.rel (0) target = $region17
  $region16: #{mff_encoder.1} parent=0 // pred_region
    _
  $region17: #{mff_encoder.1} parent=0 // pred_fallthru
    _
  // Predicated region
  $region18: #{mff_encoder.1} parent=0 // pred_check
    _
  $region19: #{mff_encoder.1} parent=0 // pred_check_branch
    %27 = sbr.rel (0) target = $region21
  $region20: #{mff_encoder.1} parent=0 // pred_region
    _
  $region21: #{mff_encoder.1} parent=0 // pred_fallthru
    _
  // Predicated region
  $region22: #{mff_encoder.1} parent=0 // pred_check
    _
  $region23: #{mff_encoder.1} parent=0 // pred_check_branch
    %29 = sbr.rel (0) target = $region25
  $region24: #{mff_encoder.1} parent=0 // pred_region
    _
  $region25: #{mff_encoder.1} parent=0 // pred_fallthru
    _
  // Predicated region
  $region26: #{mff_encoder.1} parent=0 // pred_check
    _
  $region27: #{mff_encoder.1} parent=0 // pred_check_branch
    %31 = sbr.rel (0) target = $region29
  $region28: #{mff_encoder.1} parent=0 // pred_region
    _
  $region29: #{mff_encoder.1} parent=0 // pred_fallthru
    _
  // Predicated region
  $region30: #{mff_encoder.1} parent=0 // pred_check
    _
  $region31: #{mff_encoder.1} parent=0 // pred_check_branch
    %33 = sbr.rel (0) target = $region33
  $region32: #{mff_encoder.1} parent=0 // pred_region
    _
  $region33: #{mff_encoder.1} parent=0 // pred_fallthru
    _
  // Predicated region
  $region34: #{mff_encoder.1} parent=0 // pred_check
    _
  $region35: #{mff_encoder.1} parent=0 // pred_check_branch
    %35 = sbr.rel (0) target = $region37
  $region36: #{mff_encoder.1} parent=0 // pred_region
    _
  $region37: #{mff_encoder.1} parent=0 // pred_fallthru
    _
  // Predicated region
  $region38: #{mff_encoder.1} parent=0 // pred_check
    _
  $region39: #{mff_encoder.1} parent=0 // pred_check_branch
    %37 = sbr.rel (0) target = $region41
  $region40: #{mff_encoder.1} parent=0 // pred_region
    _
  $region41: #{mff_encoder.1} parent=0 // pred_fallthru
    _
  // Predicated region
  $region42: #{mff_encoder.1} parent=0 // pred_check
    _
  $region43: #{mff_encoder.1} parent=0 // pred_check_branch
    %39 = sbr.rel (0) target = $region45
  $region44: #{mff_encoder.1} parent=0 // pred_region
    _
  $region45: #{mff_encoder.1} parent=0 // pred_fallthru
    _
  %v41 = vld [vmem:[%s0] ss:$8 sm:$0xf]
  %s42 = scalar_lea.vmem %s0, 1
  %v43 = vld [vmem:[%s42] ss:$8 sm:$0xf]
  %s44 = scalar_lea.vmem %s0, 2
  %v45 = vld [vmem:[%s44] ss:$8 sm:$0xf]
  %s46 = scalar_lea.vmem %s0, 3
  %v47 = vld [vmem:[%s46] ss:$8 sm:$0xf]
  %s48 = scalar_lea.vmem %s0, 5
  %v49 = vld [vmem:[%s48] ss:$8 sm:$0xf]
  %s50 = scalar_lea.vmem %s0, 6
  %v51 = vld [vmem:[%s50] ss:$8 sm:$0xf]
  %s52 = scalar_lea.vmem %s0, 7
  %v53 = vld [vmem:[%s52] ss:$8 sm:$0xf]
  %s54 = scalar_lea.vmem %s0, 32
  %v55 = vld [vmem:[%s54] ss:$8 sm:$0xf]
  %v56 = vld [vmem:[%s3] sm:$0xff]
  %v57 = vld [vmem:[%s3 + $0x8] sm:$0xff]
  %v58 = vld [vmem:[%s2] sm:$0xf]
  %v59 = vld [vmem:[%s2 + $0x4] sm:$0xf]
  %v60 = vld [vmem:[%s1] sm:$0xff]
  %v61 = vld [vmem:[%s1 + $0x8] sm:$0xff]
  %v62 = vld [vmem:[%s1 + $0x10] sm:$0xff]
  %v63 = vld [vmem:[%s1 + $0x18] sm:$0xff]
  %64 = vrot.lane.b32.xlu0 %v60, 17
  %v65 = vpop.permute.xlu0 %64
  %66 = vrot.lane.b32.xlu0 %v61, 17
  %v67 = vpop.permute.xlu0 %66
  %68 = vrot.lane.b32.xlu0 %v62, 17
  %v69 = vpop.permute.xlu0 %68
  %70 = vrot.lane.b32.xlu0 %v63, 17
  %v71 = vpop.permute.xlu0 %70
  %v72 = vlaneseq
  %v73 = vand.u32 %v72, 127
  %vm74 = vcmp.lt.s32.totalorder %v73, 17
  %v75 = vsel %vm74, %v69, %v71
  %v76 = vsel %vm74, %v67, %v69
  %v77 = vsel %vm74, %v65, %v67
  %v78 = vsel %vm74, %v71, %v65
  %v80 = vperm.slane %v41, 0
  %v81 = vperm.slane %v41, 1
  %v82 = vperm.slane %v41, 2
  %v83 = vperm.slane %v41, 3
  %v88 = vmul.f32 %v78, %v80
  %v89 = vmul.f32 %v77, %v81
  %v90 = vmul.f32 %v76, %v82
  %v91 = vmul.f32 %v75, %v83
  %92 = vrot.lane.b32.xlu0 %v60, 16
  %v93 = vpop.permute.xlu0 %92
  %94 = vrot.lane.b32.xlu0 %v61, 16
  %v95 = vpop.permute.xlu0 %94
  %96 = vrot.lane.b32.xlu0 %v62, 16
  %v97 = vpop.permute.xlu0 %96
  %98 = vrot.lane.b32.xlu0 %v63, 16
  %v99 = vpop.permute.xlu0 %98
  %vm100 = vcmp.lt.s32.totalorder %v73, 16
  %v101 = vsel %vm100, %v97, %v99
  %v102 = vsel %vm100, %v95, %v97
  %v103 = vsel %vm100, %v93, %v95
  %v104 = vsel %vm100, %v99, %v93
  %v106 = vperm.slane %v43, 0
  %v107 = vperm.slane %v43, 1
  %v108 = vperm.slane %v43, 2
  %v109 = vperm.slane %v43, 3
  %v114 = vmul.f32 %v104, %v106
  %v115 = vmul.f32 %v103, %v107
  %v116 = vmul.f32 %v102, %v108
  %v117 = vmul.f32 %v101, %v109
  %118 = vrot.lane.b32.xlu0 %v60, 15
  %v119 = vpop.permute.xlu0 %118
  %120 = vrot.lane.b32.xlu0 %v61, 15
  %v121 = vpop.permute.xlu0 %120
  %122 = vrot.lane.b32.xlu0 %v62, 15
  %v123 = vpop.permute.xlu0 %122
  %124 = vrot.lane.b32.xlu0 %v63, 15
  %v125 = vpop.permute.xlu0 %124
  %vm126 = vcmp.lt.s32.totalorder %v73, 15
  %v127 = vsel %vm126, %v123, %v125
  %v128 = vsel %vm126, %v121, %v123
  %v129 = vsel %vm126, %v119, %v121
  %v130 = vsel %vm126, %v125, %v119
  %v132 = vperm.slane %v45, 0
  %v133 = vperm.slane %v45, 1
  %v134 = vperm.slane %v45, 2
  %v135 = vperm.slane %v45, 3
  %v140 = vmul.f32 %v130, %v132
  %v141 = vmul.f32 %v129, %v133
  %v142 = vmul.f32 %v128, %v134
  %v143 = vmul.f32 %v127, %v135
  %144 = vrot.lane.b32.xlu0 %v60, 1
  %v145 = vpop.permute.xlu0 %144
  %146 = vrot.lane.b32.xlu0 %v61, 1
  %v147 = vpop.permute.xlu0 %146
  %148 = vrot.lane.b32.xlu0 %v62, 1
  %v149 = vpop.permute.xlu0 %148
  %150 = vrot.lane.b32.xlu0 %v63, 1
  %v151 = vpop.permute.xlu0 %150
  %vm152 = vcmp.lt.s32.totalorder %v73, 1
  %v153 = vsel %vm152, %v149, %v151
  %v154 = vsel %vm152, %v147, %v149
  %v155 = vsel %vm152, %v145, %v147
  %v156 = vsel %vm152, %v151, %v145
  %v158 = vperm.slane %v47, 0
  %v159 = vperm.slane %v47, 1
  %v160 = vperm.slane %v47, 2
  %v161 = vperm.slane %v47, 3
  %v166 = vmul.f32 %v156, %v158
  %v167 = vmul.f32 %v155, %v159
  %v168 = vmul.f32 %v154, %v160
  %v169 = vmul.f32 %v153, %v161
  %170 = vrot.lane.b32.xlu0 %v60, 127
  %v171 = vpop.permute.xlu0 %170
  %172 = vrot.lane.b32.xlu0 %v61, 127
  %v173 = vpop.permute.xlu0 %172
  %174 = vrot.lane.b32.xlu0 %v62, 127
  %v175 = vpop.permute.xlu0 %174
  %176 = vrot.lane.b32.xlu0 %v63, 127
  %v177 = vpop.permute.xlu0 %176
  %vm178 = vcmp.lt.s32.totalorder %v73, 127
  %v179 = vsel %vm178, %v175, %v177
  %v180 = vsel %vm178, %v173, %v175
  %v181 = vsel %vm178, %v171, %v173
  %v182 = vsel %vm178, %v177, %v171
  %v184 = vperm.slane %v49, 0
  %v185 = vperm.slane %v49, 1
  %v186 = vperm.slane %v49, 2
  %v187 = vperm.slane %v49, 3
  %v192 = vmul.f32 %v181, %v184
  %v193 = vmul.f32 %v180, %v185
  %v194 = vmul.f32 %v179, %v186
  %v195 = vmul.f32 %v182, %v187
  %196 = vrot.lane.b32.xlu0 %v60, 113
  %v197 = vpop.permute.xlu0 %196
  %198 = vrot.lane.b32.xlu0 %v61, 113
  %v199 = vpop.permute.xlu0 %198
  %200 = vrot.lane.b32.xlu0 %v62, 113
  %v201 = vpop.permute.xlu0 %200
  %202 = vrot.lane.b32.xlu0 %v63, 113
  %v203 = vpop.permute.xlu0 %202
  %vm204 = vcmp.lt.s32.totalorder %v73, 113
  %v205 = vsel %vm204, %v201, %v203
  %v206 = vsel %vm204, %v199, %v201
  %v207 = vsel %vm204, %v197, %v199
  %v208 = vsel %vm204, %v203, %v197
  %v210 = vperm.slane %v51, 0
  %v211 = vperm.slane %v51, 1
  %v212 = vperm.slane %v51, 2
  %v213 = vperm.slane %v51, 3
  %v218 = vmul.f32 %v207, %v210
  %v219 = vmul.f32 %v206, %v211
  %v220 = vmul.f32 %v205, %v212
  %v221 = vmul.f32 %v208, %v213
  %222 = vrot.lane.b32.xlu0 %v60, 112
  %v223 = vpop.permute.xlu0 %222
  %224 = vrot.lane.b32.xlu0 %v61, 112
  %v225 = vpop.permute.xlu0 %224
  %226 = vrot.lane.b32.xlu0 %v62, 112
  %v227 = vpop.permute.xlu0 %226
  %228 = vrot.lane.b32.xlu0 %v63, 112
  %v229 = vpop.permute.xlu0 %228
  %vm230 = vcmp.lt.s32.totalorder %v73, 112
  %v231 = vsel %vm230, %v227, %v229
  %v232 = vsel %vm230, %v225, %v227
  %v233 = vsel %vm230, %v223, %v225
  %v234 = vsel %vm230, %v229, %v223
  %v236 = vperm.slane %v53, 0
  %v237 = vperm.slane %v53, 1
  %v238 = vperm.slane %v53, 2
  %v239 = vperm.slane %v53, 3
  %v244 = vmul.f32 %v233, %v236
  %v245 = vmul.f32 %v232, %v237
  %v246 = vmul.f32 %v231, %v238
  %v247 = vmul.f32 %v234, %v239
  %248 = vrot.lane.b32.xlu0 %v60, 111
  %v249 = vpop.permute.xlu0 %248
  %250 = vrot.lane.b32.xlu0 %v61, 111
  %v251 = vpop.permute.xlu0 %250
  %252 = vrot.lane.b32.xlu0 %v62, 111
  %v253 = vpop.permute.xlu0 %252
  %254 = vrot.lane.b32.xlu0 %v63, 111
  %v255 = vpop.permute.xlu0 %254
  %vm256 = vcmp.lt.s32.totalorder %v73, 111
  %v257 = vsel %vm256, %v253, %v255
  %v258 = vsel %vm256, %v251, %v253
  %v259 = vsel %vm256, %v249, %v251
  %v260 = vsel %vm256, %v255, %v249
  %v262 = vperm.slane %v55, 0
  %v263 = vperm.slane %v55, 1
  %v264 = vperm.slane %v55, 2
  %v265 = vperm.slane %v55, 3
  %v270 = vmul.f32 %v259, %v262
  %v271 = vmul.f32 %v258, %v263
  %v272 = vmul.f32 %v257, %v264
  %v273 = vmul.f32 %v260, %v265
  %v274 = vpack.c.bf16 %v114, %v88
  %v275 = vpack.c.bf16 %v115, %v89
  %v276 = vpack.c.bf16 %v116, %v90
  %v277 = vpack.c.bf16 %v117, %v91
  %v278 = vpack.c.bf16 %v166, %v140
  %v279 = vpack.c.bf16 %v167, %v141
  %v280 = vpack.c.bf16 %v168, %v142
  %v281 = vpack.c.bf16 %v169, %v143
  %v282 = vpack.c.bf16 %v192, %v60
  %v283 = vpack.c.bf16 %v193, %v61
  %v284 = vpack.c.bf16 %v194, %v62
  %v285 = vpack.c.bf16 %v195, %v63
  %v286 = vpack.c.bf16 %v244, %v218
  %v287 = vpack.c.bf16 %v245, %v219
  %v288 = vpack.c.bf16 %v246, %v220
  %v289 = vpack.c.bf16 %v247, %v221
  %v290 = vpack.c.bf16 %v270, %v270
  %v291 = vpack.c.bf16 %v271, %v271
  %v292 = vpack.c.bf16 %v272, %v272
  %v293 = vpack.c.bf16 %v273, %v273
  %v296 = vunpack.c.l.b16 %v58
  %v297 = vunpack.c.l.b16 %v59
  %v298 = vpack.c.b16 %v297, %v296
  %vm299 = vcmask 588800
  %v301 = vsel %vm299, %v298, 0
  %vm303 = vcmask 1043456
  %v305 = vsel %vm303, %v290, 0
  %v308 = vsel %vm303, %v291, 0
  %v311 = vsel %vm303, %v292, 0
  %v314 = vsel %vm303, %v293, 0
  %316 = vmatpush.bf16.msra.mxu0 0
  %317 = vmatpush.bf16.msra.mxu0 0
  %318 = vmatpush.bf16.msra.mxu0 0
  %319 = vmatpush.bf16.msra.mxu0 %v305
  %320 = vmatpush.bf16.msra.mxu0 %v286
  %321 = vmatpush.bf16.msra.mxu0 %v282
  %322 = vmatpush.bf16.msra.mxu0 %v278
  %323 = vmatpush.bf16.msra.mxu0 %v274
  %324 = vmatmul.bf16.gmra.mxu0 %v301
  %v325 = vpop.f32.mrf.mxu0
  %v326 = vadd.f32 0.0, %v325
  %v327 = vpop.f32.mrf.mxu0
  %v328 = vadd.f32 0.0, %v327
  %329 = vdwg.mxu0
  %330 = vmatpush.bf16.msra.mxu0 0
  %331 = vmatpush.bf16.msra.mxu0 0
  %332 = vmatpush.bf16.msra.mxu0 0
  %333 = vmatpush.bf16.msra.mxu0 %v308
  %334 = vmatpush.bf16.msra.mxu0 %v287
  %335 = vmatpush.bf16.msra.mxu0 %v283
  %336 = vmatpush.bf16.msra.mxu0 %v279
  %337 = vmatpush.bf16.msra.mxu0 %v275
  %338 = vmatmul.bf16.gmra.mxu0 %v301
  %v339 = vpop.f32.mrf.mxu0
  %v340 = vadd.f32 0.0, %v339
  %v341 = vpop.f32.mrf.mxu0
  %v342 = vadd.f32 0.0, %v341
  %343 = vdwg.mxu0
  %344 = vmatpush.bf16.msra.mxu0 0
  %345 = vmatpush.bf16.msra.mxu0 0
  %346 = vmatpush.bf16.msra.mxu0 0
  %347 = vmatpush.bf16.msra.mxu0 %v311
  %348 = vmatpush.bf16.msra.mxu0 %v288
  %349 = vmatpush.bf16.msra.mxu0 %v284
  %350 = vmatpush.bf16.msra.mxu0 %v280
  %351 = vmatpush.bf16.msra.mxu0 %v276
  %352 = vmatmul.bf16.gmra.mxu0 %v301
  %v353 = vpop.f32.mrf.mxu0
  %v354 = vadd.f32 0.0, %v353
  %v355 = vpop.f32.mrf.mxu0
  %v356 = vadd.f32 0.0, %v355
  %357 = vdwg.mxu0
  %358 = vmatpush.bf16.msra.mxu0 0
  %359 = vmatpush.bf16.msra.mxu0 0
  %360 = vmatpush.bf16.msra.mxu0 0
  %361 = vmatpush.bf16.msra.mxu0 %v314
  %362 = vmatpush.bf16.msra.mxu0 %v289
  %363 = vmatpush.bf16.msra.mxu0 %v285
  %364 = vmatpush.bf16.msra.mxu0 %v281
  %365 = vmatpush.bf16.msra.mxu0 %v277
  %366 = vmatmul.bf16.gmra.mxu0 %v301
  %v367 = vpop.f32.mrf.mxu0
  %v368 = vadd.f32 0.0, %v367
  %v369 = vpop.f32.mrf.mxu0
  %v370 = vadd.f32 0.0, %v369
  %371 = vdwg.mxu0
  %373 = vset.pattern.permute.xlu0 0
  %374 = vperm.xlu0 %373, %v56
  %v375 = vpop.permute.xlu0 %374
  %378 = vset.pattern.permute.xlu0 0
  %379 = vperm.xlu0 %378, %v57
  %v380 = vpop.permute.xlu0 %379
  %v382 = vmul.f32 %v375, %v326
  %v383 = vmul.f32 %v375, %v340
  %v384 = vmul.f32 %v375, %v354
  %v385 = vmul.f32 %v375, %v368
  %v386 = vmul.f32 %v380, %v328
  %v387 = vmul.f32 %v380, %v342
  %v388 = vmul.f32 %v380, %v356
  %v389 = vmul.f32 %v380, %v370
  %v390 = vld [vmem:[%s4] sm:$0xff]
  %v391 = vld [vmem:[%s4 + $0x8] sm:$0xff]
  %393 = vset.pattern.permute.xlu0 0
  %394 = vperm.xlu0 %393, %v390
  %v395 = vpop.permute.xlu0 %394
  %398 = vset.pattern.permute.xlu0 0
  %399 = vperm.xlu0 %398, %v391
  %v400 = vpop.permute.xlu0 %399
  %v402 = vadd.f32 %v382, %v395
  %v403 = vadd.f32 %v383, %v395
  %v404 = vadd.f32 %v384, %v395
  %v405 = vadd.f32 %v385, %v395
  %v406 = vadd.f32 %v386, %v400
  %v407 = vadd.f32 %v387, %v400
  %v408 = vadd.f32 %v388, %v400
  %v409 = vadd.f32 %v389, %v400
  %v410 = vmax.f32 %v402, 0.0
  %v411 = vmax.f32 %v403, 0.0
  %v412 = vmax.f32 %v404, 0.0
  %v413 = vmax.f32 %v405, 0.0
  %v414 = vmax.f32 %v406, 0.0
  %v415 = vmax.f32 %v407, 0.0
  %v416 = vmax.f32 %v408, 0.0
  %v417 = vmax.f32 %v409, 0.0
  %v418 = vld [vmem:[%s5] sm:$0xff]
  %v419 = vld [vmem:[%s5 + $0x8] sm:$0xff]
  %v420 = vld [vmem:[%s5 + $0x10] sm:$0xff]
  %v421 = vld [vmem:[%s5 + $0x18] sm:$0xff]
  %v422 = vld [vmem:[%s5 + $0x20] sm:$0xff]
  %v423 = vld [vmem:[%s5 + $0x28] sm:$0xff]
  %424 = vrot.lane.b32.xlu0 %v410, 17
  %v425 = vpop.permute.xlu0 %424
  %426 = vrot.lane.b32.xlu0 %v414, 17
  %v427 = vpop.permute.xlu0 %426
  %428 = vrot.lane.b32.xlu0 %v411, 17
  %v429 = vpop.permute.xlu0 %428
  %430 = vrot.lane.b32.xlu0 %v415, 17
  %v431 = vpop.permute.xlu0 %430
  %432 = vrot.lane.b32.xlu0 %v412, 17
  %v433 = vpop.permute.xlu0 %432
  %434 = vrot.lane.b32.xlu0 %v416, 17
  %v435 = vpop.permute.xlu0 %434
  %436 = vrot.lane.b32.xlu0 %v413, 17
  %v437 = vpop.permute.xlu0 %436
  %438 = vrot.lane.b32.xlu0 %v417, 17
  %v439 = vpop.permute.xlu0 %438
  %v440 = vsel %vm74, %v433, %v437
  %v441 = vsel %vm74, %v435, %v439
  %v442 = vsel %vm74, %v429, %v433
  %v443 = vsel %vm74, %v431, %v435
  %v444 = vsel %vm74, %v425, %v429
  %v445 = vsel %vm74, %v427, %v431
  %v446 = vsel %vm74, %v437, %v425
  %v447 = vsel %vm74, %v439, %v427
  %v448 = vmul.f32 %v446, %v80
  %v449 = vmul.f32 %v444, %v81
  %v450 = vmul.f32 %v442, %v82
  %v451 = vmul.f32 %v440, %v83
  %v452 = vmul.f32 %v447, %v80
  %v453 = vmul.f32 %v445, %v81
  %v454 = vmul.f32 %v443, %v82
  %v455 = vmul.f32 %v441, %v83
  %456 = vrot.lane.b32.xlu0 %v410, 16
  %v457 = vpop.permute.xlu0 %456
  %458 = vrot.lane.b32.xlu0 %v414, 16
  %v459 = vpop.permute.xlu0 %458
  %460 = vrot.lane.b32.xlu0 %v411, 16
  %v461 = vpop.permute.xlu0 %460
  %462 = vrot.lane.b32.xlu0 %v415, 16
  %v463 = vpop.permute.xlu0 %462
  %464 = vrot.lane.b32.xlu0 %v412, 16
  %v465 = vpop.permute.xlu0 %464
  %466 = vrot.lane.b32.xlu0 %v416, 16
  %v467 = vpop.permute.xlu0 %466
  %468 = vrot.lane.b32.xlu0 %v413, 16
  %v469 = vpop.permute.xlu0 %468
  %470 = vrot.lane.b32.xlu0 %v417, 16
  %v471 = vpop.permute.xlu0 %470
  %v472 = vsel %vm100, %v465, %v469
  %v473 = vsel %vm100, %v467, %v471
  %v474 = vsel %vm100, %v461, %v465
  %v475 = vsel %vm100, %v463, %v467
  %v476 = vsel %vm100, %v457, %v461
  %v477 = vsel %vm100, %v459, %v463
  %v478 = vsel %vm100, %v469, %v457
  %v479 = vsel %vm100, %v471, %v459
  %v480 = vmul.f32 %v478, %v106
  %v481 = vmul.f32 %v476, %v107
  %v482 = vmul.f32 %v474, %v108
  %v483 = vmul.f32 %v472, %v109
  %v484 = vmul.f32 %v479, %v106
  %v485 = vmul.f32 %v477, %v107
  %v486 = vmul.f32 %v475, %v108
  %v487 = vmul.f32 %v473, %v109
  %488 = vrot.lane.b32.xlu0 %v410, 15
  %v489 = vpop.permute.xlu0 %488
  %490 = vrot.lane.b32.xlu0 %v414, 15
  %v491 = vpop.permute.xlu0 %490
  %492 = vrot.lane.b32.xlu0 %v411, 15
  %v493 = vpop.permute.xlu0 %492
  %494 = vrot.lane.b32.xlu0 %v415, 15
  %v495 = vpop.permute.xlu0 %494
  %496 = vrot.lane.b32.xlu0 %v412, 15
  %v497 = vpop.permute.xlu0 %496
  %498 = vrot.lane.b32.xlu0 %v416, 15
  %v499 = vpop.permute.xlu0 %498
  %500 = vrot.lane.b32.xlu0 %v413, 15
  %v501 = vpop.permute.xlu0 %500
  %502 = vrot.lane.b32.xlu0 %v417, 15
  %v503 = vpop.permute.xlu0 %502
  %v504 = vsel %vm126, %v497, %v501
  %v505 = vsel %vm126, %v499, %v503
  %v506 = vsel %vm126, %v493, %v497
  %v507 = vsel %vm126, %v495, %v499
  %v508 = vsel %vm126, %v489, %v493
  %v509 = vsel %vm126, %v491, %v495
  %v510 = vsel %vm126, %v501, %v489
  %v511 = vsel %vm126, %v503, %v491
  %v512 = vmul.f32 %v510, %v132
  %v513 = vmul.f32 %v508, %v133
  %v514 = vmul.f32 %v506, %v134
  %v515 = vmul.f32 %v504, %v135
  %v516 = vmul.f32 %v511, %v132
  %v517 = vmul.f32 %v509, %v133
  %v518 = vmul.f32 %v507, %v134
  %v519 = vmul.f32 %v505, %v135
  %520 = vrot.lane.b32.xlu0 %v410, 1
  %v521 = vpop.permute.xlu0 %520
  %522 = vrot.lane.b32.xlu0 %v414, 1
  %v523 = vpop.permute.xlu0 %522
  %524 = vrot.lane.b32.xlu0 %v411, 1
  %v525 = vpop.permute.xlu0 %524
  %526 = vrot.lane.b32.xlu0 %v415, 1
  %v527 = vpop.permute.xlu0 %526
  %528 = vrot.lane.b32.xlu0 %v412, 1
  %v529 = vpop.permute.xlu0 %528
  %530 = vrot.lane.b32.xlu0 %v416, 1
  %v531 = vpop.permute.xlu0 %530
  %532 = vrot.lane.b32.xlu0 %v413, 1
  %v533 = vpop.permute.xlu0 %532
  %534 = vrot.lane.b32.xlu0 %v417, 1
  %v535 = vpop.permute.xlu0 %534
  %v536 = vsel %vm152, %v529, %v533
  %v537 = vsel %vm152, %v531, %v535
  %v538 = vsel %vm152, %v525, %v529
  %v539 = vsel %vm152, %v527, %v531
  %v540 = vsel %vm152, %v521, %v525
  %v541 = vsel %vm152, %v523, %v527
  %v542 = vsel %vm152, %v533, %v521
  %v543 = vsel %vm152, %v535, %v523
  %v544 = vmul.f32 %v542, %v158
  %v545 = vmul.f32 %v540, %v159
  %v546 = vmul.f32 %v538, %v160
  %v547 = vmul.f32 %v536, %v161
  %v548 = vmul.f32 %v543, %v158
  %v549 = vmul.f32 %v541, %v159
  %v550 = vmul.f32 %v539, %v160
  %v551 = vmul.f32 %v537, %v161
  %552 = vrot.lane.b32.xlu0 %v410, 127
  %v553 = vpop.permute.xlu0 %552
  %554 = vrot.lane.b32.xlu0 %v414, 127
  %v555 = vpop.permute.xlu0 %554
  %556 = vrot.lane.b32.xlu0 %v411, 127
  %v557 = vpop.permute.xlu0 %556
  %558 = vrot.lane.b32.xlu0 %v415, 127
  %v559 = vpop.permute.xlu0 %558
  %560 = vrot.lane.b32.xlu0 %v412, 127
  %v561 = vpop.permute.xlu0 %560
  %562 = vrot.lane.b32.xlu0 %v416, 127
  %v563 = vpop.permute.xlu0 %562
  %564 = vrot.lane.b32.xlu0 %v413, 127
  %v565 = vpop.permute.xlu0 %564
  %566 = vrot.lane.b32.xlu0 %v417, 127
  %v567 = vpop.permute.xlu0 %566
  %v568 = vsel %vm178, %v561, %v565
  %v569 = vsel %vm178, %v563, %v567
  %v570 = vsel %vm178, %v557, %v561
  %v571 = vsel %vm178, %v559, %v563
  %v572 = vsel %vm178, %v553, %v557
  %v573 = vsel %vm178, %v555, %v559
  %v574 = vsel %vm178, %v565, %v553
  %v575 = vsel %vm178, %v567, %v555
  %v576 = vmul.f32 %v572, %v184
  %v577 = vmul.f32 %v570, %v185
  %v578 = vmul.f32 %v568, %v186
  %v579 = vmul.f32 %v574, %v187
  %v580 = vmul.f32 %v573, %v184
  %v581 = vmul.f32 %v571, %v185
  %v582 = vmul.f32 %v569, %v186
  %v583 = vmul.f32 %v575, %v187
  %584 = vrot.lane.b32.xlu0 %v410, 113
  %v585 = vpop.permute.xlu0 %584
  %586 = vrot.lane.b32.xlu0 %v414, 113
  %v587 = vpop.permute.xlu0 %586
  %588 = vrot.lane.b32.xlu0 %v411, 113
  %v589 = vpop.permute.xlu0 %588
  %590 = vrot.lane.b32.xlu0 %v415, 113
  %v591 = vpop.permute.xlu0 %590
  %592 = vrot.lane.b32.xlu0 %v412, 113
  %v593 = vpop.permute.xlu0 %592
  %594 = vrot.lane.b32.xlu0 %v416, 113
  %v595 = vpop.permute.xlu0 %594
  %596 = vrot.lane.b32.xlu0 %v413, 113
  %v597 = vpop.permute.xlu0 %596
  %598 = vrot.lane.b32.xlu0 %v417, 113
  %v599 = vpop.permute.xlu0 %598
  %v600 = vsel %vm204, %v593, %v597
  %v601 = vsel %vm204, %v595, %v599
  %v602 = vsel %vm204, %v589, %v593
  %v603 = vsel %vm204, %v591, %v595
  %v604 = vsel %vm204, %v585, %v589
  %v605 = vsel %vm204, %v587, %v591
  %v606 = vsel %vm204, %v597, %v585
  %v607 = vsel %vm204, %v599, %v587
  %v608 = vmul.f32 %v604, %v210
  %v609 = vmul.f32 %v602, %v211
  %v610 = vmul.f32 %v600, %v212
  %v611 = vmul.f32 %v606, %v213
  %v612 = vmul.f32 %v605, %v210
  %v613 = vmul.f32 %v603, %v211
  %v614 = vmul.f32 %v601, %v212
  %v615 = vmul.f32 %v607, %v213
  %616 = vrot.lane.b32.xlu0 %v410, 112
  %v617 = vpop.permute.xlu0 %616
  %618 = vrot.lane.b32.xlu0 %v414, 112
  %v619 = vpop.permute.xlu0 %618
  %620 = vrot.lane.b32.xlu0 %v411, 112
  %v621 = vpop.permute.xlu0 %620
  %622 = vrot.lane.b32.xlu0 %v415, 112
  %v623 = vpop.permute.xlu0 %622
  %624 = vrot.lane.b32.xlu0 %v412, 112
  %v625 = vpop.permute.xlu0 %624
  %626 = vrot.lane.b32.xlu0 %v416, 112
  %v627 = vpop.permute.xlu0 %626
  %628 = vrot.lane.b32.xlu0 %v413, 112
  %v629 = vpop.permute.xlu0 %628
  %630 = vrot.lane.b32.xlu0 %v417, 112
  %v631 = vpop.permute.xlu0 %630
  %v632 = vsel %vm230, %v625, %v629
  %v633 = vsel %vm230, %v627, %v631
  %v634 = vsel %vm230, %v621, %v625
  %v635 = vsel %vm230, %v623, %v627
  %v636 = vsel %vm230, %v617, %v621
  %v637 = vsel %vm230, %v619, %v623
  %v638 = vsel %vm230, %v629, %v617
  %v639 = vsel %vm230, %v631, %v619
  %v640 = vmul.f32 %v636, %v236
  %v641 = vmul.f32 %v634, %v237
  %v642 = vmul.f32 %v632, %v238
  %v643 = vmul.f32 %v638, %v239
  %v644 = vmul.f32 %v637, %v236
  %v645 = vmul.f32 %v635, %v237
  %v646 = vmul.f32 %v633, %v238
  %v647 = vmul.f32 %v639, %v239
  %648 = vrot.lane.b32.xlu0 %v410, 111
  %v649 = vpop.permute.xlu0 %648
  %650 = vrot.lane.b32.xlu0 %v414, 111
  %v651 = vpop.permute.xlu0 %650
  %652 = vrot.lane.b32.xlu0 %v411, 111
  %v653 = vpop.permute.xlu0 %652
  %654 = vrot.lane.b32.xlu0 %v415, 111
  %v655 = vpop.permute.xlu0 %654
  %656 = vrot.lane.b32.xlu0 %v412, 111
  %v657 = vpop.permute.xlu0 %656
  %658 = vrot.lane.b32.xlu0 %v416, 111
  %v659 = vpop.permute.xlu0 %658
  %660 = vrot.lane.b32.xlu0 %v413, 111
  %v661 = vpop.permute.xlu0 %660
  %662 = vrot.lane.b32.xlu0 %v417, 111
  %v663 = vpop.permute.xlu0 %662
  %v664 = vsel %vm256, %v657, %v661
  %v665 = vsel %vm256, %v659, %v663
  %v666 = vsel %vm256, %v653, %v657
  %v667 = vsel %vm256, %v655, %v659
  %v668 = vsel %vm256, %v649, %v653
  %v669 = vsel %vm256, %v651, %v655
  %v670 = vsel %vm256, %v661, %v649
  %v671 = vsel %vm256, %v663, %v651
  %v672 = vmul.f32 %v668, %v262
  %v673 = vmul.f32 %v666, %v263
  %v674 = vmul.f32 %v664, %v264
  %v675 = vmul.f32 %v670, %v265
  %v676 = vmul.f32 %v669, %v262
  %v677 = vmul.f32 %v667, %v263
  %v678 = vmul.f32 %v665, %v264
  %v679 = vmul.f32 %v671, %v265
  %v680 = vpack.c.bf16 %v452, %v448
  %v681 = vpack.c.bf16 %v453, %v449
  %v682 = vpack.c.bf16 %v454, %v450
  %v683 = vpack.c.bf16 %v455, %v451
  %v684 = vpack.c.bf16 %v484, %v480
  %v685 = vpack.c.bf16 %v485, %v481
  %v686 = vpack.c.bf16 %v486, %v482
  %v687 = vpack.c.bf16 %v487, %v483
  %v688 = vpack.c.bf16 %v516, %v512
  %v689 = vpack.c.bf16 %v517, %v513
  %v690 = vpack.c.bf16 %v518, %v514
  %v691 = vpack.c.bf16 %v519, %v515
  %v692 = vpack.c.bf16 %v548, %v544
  %v693 = vpack.c.bf16 %v549, %v545
  %v694 = vpack.c.bf16 %v550, %v546
  %v695 = vpack.c.bf16 %v551, %v547
  %v696 = vpack.c.bf16 %v414, %v410
  %v697 = vpack.c.bf16 %v415, %v411
  %v698 = vpack.c.bf16 %v416, %v412
  %v699 = vpack.c.bf16 %v417, %v413
  %v700 = vpack.c.bf16 %v580, %v576
  %v701 = vpack.c.bf16 %v581, %v577
  %v702 = vpack.c.bf16 %v582, %v578
  %v703 = vpack.c.bf16 %v583, %v579
  %v704 = vpack.c.bf16 %v612, %v608
  %v705 = vpack.c.bf16 %v613, %v609
  %v706 = vpack.c.bf16 %v614, %v610
  %v707 = vpack.c.bf16 %v615, %v611
  %v708 = vpack.c.bf16 %v644, %v640
  %v709 = vpack.c.bf16 %v645, %v641
  %v710 = vpack.c.bf16 %v646, %v642
  %v711 = vpack.c.bf16 %v647, %v643
  %v712 = vpack.c.bf16 %v676, %v672
  %v713 = vpack.c.bf16 %v677, %v673
  %v714 = vpack.c.bf16 %v678, %v674
  %v715 = vpack.c.bf16 %v679, %v675
  %v722 = vunpack.c.l.b16 %v418
  %v723 = vunpack.c.h.b16 %v418
  %v724 = vunpack.c.l.b16 %v419
  %v725 = vunpack.c.h.b16 %v419
  %v726 = vunpack.c.l.b16 %v420
  %v727 = vunpack.c.h.b16 %v420
  %v728 = vunpack.c.l.b16 %v421
  %v729 = vunpack.c.h.b16 %v421
  %v730 = vunpack.c.l.b16 %v422
  %v731 = vunpack.c.h.b16 %v422
  %v732 = vunpack.c.l.b16 %v423
  %v733 = vunpack.c.h.b16 %v423
  %v734 = vpack.c.b16 %v724, %v722
  %v735 = vpack.c.b16 %v725, %v723
  %v736 = vpack.c.b16 %v728, %v726
  %v737 = vpack.c.b16 %v729, %v727
  %v738 = vpack.c.b16 %v732, %v730
  %v739 = vpack.c.b16 %v733, %v731
  %vm743 = vcmask 130048
  %v745 = vsel %vm743, %v735, 0
  %v748 = vsel %vm743, %v737, 0
  %v751 = vsel %vm743, %v739, 0
  %753 = vmatpush.bf16.msra.mxu0 %v708
  %754 = vmatpush.bf16.msra.mxu0 %v704
  %755 = vmatpush.bf16.msra.mxu0 %v700
  %756 = vmatpush.bf16.msra.mxu0 %v696
  %757 = vmatpush.bf16.msra.mxu0 %v692
  %758 = vmatpush.bf16.msra.mxu0 %v688
  %759 = vmatpush.bf16.msra.mxu0 %v684
  %760 = vmatpush.bf16.msra.mxu0 %v680
  %761 = vmatmul.bf16.gmra.mxu0 %v734
  %v762 = vpop.f32.mrf.mxu0
  %v763 = vadd.f32 0.0, %v762
  %v764 = vpop.f32.mrf.mxu0
  %v765 = vadd.f32 0.0, %v764
  %766 = vmatmul.bf16.gmra.mxu0 %v736
  %v767 = vpop.f32.mrf.mxu0
  %v768 = vadd.f32 0.0, %v767
  %v769 = vpop.f32.mrf.mxu0
  %v770 = vadd.f32 0.0, %v769
  %771 = vmatmul.bf16.gmra.mxu0 %v738
  %v772 = vpop.f32.mrf.mxu0
  %v773 = vadd.f32 0.0, %v772
  %v774 = vpop.f32.mrf.mxu0
  %v775 = vadd.f32 0.0, %v774
  %776 = vdwg.mxu0
  %777 = vmatpush.bf16.msra.mxu0 0
  %778 = vmatpush.bf16.msra.mxu0 0
  %779 = vmatpush.bf16.msra.mxu0 0
  %780 = vmatpush.bf16.msra.mxu0 0
  %781 = vmatpush.bf16.msra.mxu0 0
  %782 = vmatpush.bf16.msra.mxu0 0
  %783 = vmatpush.bf16.msra.mxu0 0
  %784 = vmatpush.bf16.msra.mxu0 %v712
  %785 = vmatmul.bf16.gmra.mxu0 %v745
  %v786 = vpop.f32.mrf.mxu0
  %v787 = vadd.f32 %v763, %v786
  %v788 = vpop.f32.mrf.mxu0
  %v789 = vadd.f32 %v765, %v788
  %790 = vmatmul.bf16.gmra.mxu0 %v748
  %v791 = vpop.f32.mrf.mxu0
  %v792 = vadd.f32 %v768, %v791
  %v793 = vpop.f32.mrf.mxu0
  %v794 = vadd.f32 %v770, %v793
  %795 = vmatmul.bf16.gmra.mxu0 %v751
  %v796 = vpop.f32.mrf.mxu0
  %v797 = vadd.f32 %v773, %v796
  %v798 = vpop.f32.mrf.mxu0
  %v799 = vadd.f32 %v775, %v798
  %800 = vdwg.mxu0
  %801 = vmatpush.bf16.msra.mxu0 %v709
  %802 = vmatpush.bf16.msra.mxu0 %v705
  %803 = vmatpush.bf16.msra.mxu0 %v701
  %804 = vmatpush.bf16.msra.mxu0 %v697
  %805 = vmatpush.bf16.msra.mxu0 %v693
  %806 = vmatpush.bf16.msra.mxu0 %v689
  %807 = vmatpush.bf16.msra.mxu0 %v685
  %808 = vmatpush.bf16.msra.mxu0 %v681
  %809 = vmatmul.bf16.gmra.mxu0 %v734
  %v810 = vpop.f32.mrf.mxu0
  %v811 = vadd.f32 0.0, %v810
  %v812 = vpop.f32.mrf.mxu0
  %v813 = vadd.f32 0.0, %v812
  %814 = vmatmul.bf16.gmra.mxu0 %v736
  %v815 = vpop.f32.mrf.mxu0
  %v816 = vadd.f32 0.0, %v815
  %v817 = vpop.f32.mrf.mxu0
  %v818 = vadd.f32 0.0, %v817
  %819 = vmatmul.bf16.gmra.mxu0 %v738
  %v820 = vpop.f32.mrf.mxu0
  %v821 = vadd.f32 0.0, %v820
  %v822 = vpop.f32.mrf.mxu0
  %v823 = vadd.f32 0.0, %v822
  %824 = vdwg.mxu0
  %825 = vmatpush.bf16.msra.mxu0 0
  %826 = vmatpush.bf16.msra.mxu0 0
  %827 = vmatpush.bf16.msra.mxu0 0
  %828 = vmatpush.bf16.msra.mxu0 0
  %829 = vmatpush.bf16.msra.mxu0 0
  %830 = vmatpush.bf16.msra.mxu0 0
  %831 = vmatpush.bf16.msra.mxu0 0
  %832 = vmatpush.bf16.msra.mxu0 %v713
  %833 = vmatmul.bf16.gmra.mxu0 %v745
  %v834 = vpop.f32.mrf.mxu0
  %v835 = vadd.f32 %v811, %v834
  %v836 = vpop.f32.mrf.mxu0
  %v837 = vadd.f32 %v813, %v836
  %838 = vmatmul.bf16.gmra.mxu0 %v748
  %v839 = vpop.f32.mrf.mxu0
  %v840 = vadd.f32 %v816, %v839
  %v841 = vpop.f32.mrf.mxu0
  %v842 = vadd.f32 %v818, %v841
  %843 = vmatmul.bf16.gmra.mxu0 %v751
  %v844 = vpop.f32.mrf.mxu0
  %v845 = vadd.f32 %v821, %v844
  %v846 = vpop.f32.mrf.mxu0
  %v847 = vadd.f32 %v823, %v846
  %848 = vdwg.mxu0
  %849 = vmatpush.bf16.msra.mxu0 %v710
  %850 = vmatpush.bf16.msra.mxu0 %v706
  %851 = vmatpush.bf16.msra.mxu0 %v702
  %852 = vmatpush.bf16.msra.mxu0 %v698
  %853 = vmatpush.bf16.msra.mxu0 %v694
  %854 = vmatpush.bf16.msra.mxu0 %v690
  %855 = vmatpush.bf16.msra.mxu0 %v686
  %856 = vmatpush.bf16.msra.mxu0 %v682
  %857 = vmatmul.bf16.gmra.mxu0 %v734
  %v858 = vpop.f32.mrf.mxu0
  %v859 = vadd.f32 0.0, %v858
  %v860 = vpop.f32.mrf.mxu0
  %v861 = vadd.f32 0.0, %v860
  %862 = vmatmul.bf16.gmra.mxu0 %v736
  %v863 = vpop.f32.mrf.mxu0
  %v864 = vadd.f32 0.0, %v863
  %v865 = vpop.f32.mrf.mxu0
  %v866 = vadd.f32 0.0, %v865
  %867 = vmatmul.bf16.gmra.mxu0 %v738
  %v868 = vpop.f32.mrf.mxu0
  %v869 = vadd.f32 0.0, %v868
  %v870 = vpop.f32.mrf.mxu0
  %v871 = vadd.f32 0.0, %v870
  %872 = vdwg.mxu0
  %873 = vmatpush.bf16.msra.mxu0 0
  %874 = vmatpush.bf16.msra.mxu0 0
  %875 = vmatpush.bf16.msra.mxu0 0
  %876 = vmatpush.bf16.msra.mxu0 0
  %877 = vmatpush.bf16.msra.mxu0 0
  %878 = vmatpush.bf16.msra.mxu0 0
  %879 = vmatpush.bf16.msra.mxu0 0
  %880 = vmatpush.bf16.msra.mxu0 %v714
  %881 = vmatmul.bf16.gmra.mxu0 %v745
  %v882 = vpop.f32.mrf.mxu0
  %v883 = vadd.f32 %v859, %v882
  %v884 = vpop.f32.mrf.mxu0
  %v885 = vadd.f32 %v861, %v884
  %886 = vmatmul.bf16.gmra.mxu0 %v748
  %v887 = vpop.f32.mrf.mxu0
  %v888 = vadd.f32 %v864, %v887
  %v889 = vpop.f32.mrf.mxu0
  %v890 = vadd.f32 %v866, %v889
  %891 = vmatmul.bf16.gmra.mxu0 %v751
  %v892 = vpop.f32.mrf.mxu0
  %v893 = vadd.f32 %v869, %v892
  %v894 = vpop.f32.mrf.mxu0
  %v895 = vadd.f32 %v871, %v894
  %896 = vdwg.mxu0
  %897 = vmatpush.bf16.msra.mxu0 %v711
  %898 = vmatpush.bf16.msra.mxu0 %v707
  %899 = vmatpush.bf16.msra.mxu0 %v703
  %900 = vmatpush.bf16.msra.mxu0 %v699
  %901 = vmatpush.bf16.msra.mxu0 %v695
  %902 = vmatpush.bf16.msra.mxu0 %v691
  %903 = vmatpush.bf16.msra.mxu0 %v687
  %904 = vmatpush.bf16.msra.mxu0 %v683
  %905 = vmatmul.bf16.gmra.mxu0 %v734
  %v906 = vpop.f32.mrf.mxu0
  %v907 = vadd.f32 0.0, %v906
  %v908 = vpop.f32.mrf.mxu0
  %v909 = vadd.f32 0.0, %v908
  %910 = vmatmul.bf16.gmra.mxu0 %v736
  %v911 = vpop.f32.mrf.mxu0
  %v912 = vadd.f32 0.0, %v911
  %v913 = vpop.f32.mrf.mxu0
  %v914 = vadd.f32 0.0, %v913
  %915 = vmatmul.bf16.gmra.mxu0 %v738
  %v916 = vpop.f32.mrf.mxu0
  %v917 = vadd.f32 0.0, %v916
  %v918 = vpop.f32.mrf.mxu0
  %v919 = vadd.f32 0.0, %v918
  %920 = vdwg.mxu0
  %921 = vmatpush.bf16.msra.mxu0 0
  %922 = vmatpush.bf16.msra.mxu0 0
  %923 = vmatpush.bf16.msra.mxu0 0
  %924 = vmatpush.bf16.msra.mxu0 0
  %925 = vmatpush.bf16.msra.mxu0 0
  %926 = vmatpush.bf16.msra.mxu0 0
  %927 = vmatpush.bf16.msra.mxu0 0
  %928 = vmatpush.bf16.msra.mxu0 %v715
  %929 = vmatmul.bf16.gmra.mxu0 %v745
  %v930 = vpop.f32.mrf.mxu0
  %v931 = vadd.f32 %v907, %v930
  %v932 = vpop.f32.mrf.mxu0
  %v933 = vadd.f32 %v909, %v932
  %934 = vmatmul.bf16.gmra.mxu0 %v748
  %v935 = vpop.f32.mrf.mxu0
  %v936 = vadd.f32 %v912, %v935
  %v937 = vpop.f32.mrf.mxu0
  %v938 = vadd.f32 %v914, %v937
  %939 = vmatmul.bf16.gmra.mxu0 %v751
  %v940 = vpop.f32.mrf.mxu0
  %v941 = vadd.f32 %v917, %v940
  %v942 = vpop.f32.mrf.mxu0
  %v943 = vadd.f32 %v919, %v942
  %944 = vdwg.mxu0
  %v945 = vmax.f32 %v787, 0.0
  %v946 = vmax.f32 %v835, 0.0
  %v947 = vmax.f32 %v883, 0.0
  %v948 = vmax.f32 %v931, 0.0
  %v949 = vmax.f32 %v789, 0.0
  %v950 = vmax.f32 %v837, 0.0
  %v951 = vmax.f32 %v885, 0.0
  %v952 = vmax.f32 %v933, 0.0
  %v953 = vmax.f32 %v792, 0.0
  %v954 = vmax.f32 %v840, 0.0
  %v955 = vmax.f32 %v888, 0.0
  %v956 = vmax.f32 %v936, 0.0
  %v957 = vmax.f32 %v794, 0.0
  %v958 = vmax.f32 %v842, 0.0
  %v959 = vmax.f32 %v890, 0.0
  %v960 = vmax.f32 %v938, 0.0
  %v961 = vmax.f32 %v797, 0.0
  %v962 = vmax.f32 %v845, 0.0
  %v963 = vmax.f32 %v893, 0.0
  %v964 = vmax.f32 %v941, 0.0
  %v965 = vmax.f32 %v799, 0.0
  %v966 = vmax.f32 %v847, 0.0
  %v967 = vmax.f32 %v895, 0.0
  %v968 = vmax.f32 %v943, 0.0
  %v969 = vld [vmem:[%s6] sm:$0xff]
  %v970 = vld [vmem:[%s6 + $0x8] sm:$0xff]
  %971 = vrot.lane.b32.xlu0 %v961, 17
  %v972 = vpop.permute.xlu0 %971
  %973 = vrot.lane.b32.xlu0 %v965, 17
  %v974 = vpop.permute.xlu0 %973
  %975 = vrot.lane.b32.xlu0 %v962, 17
  %v976 = vpop.permute.xlu0 %975
  %977 = vrot.lane.b32.xlu0 %v966, 17
  %v978 = vpop.permute.xlu0 %977
  %979 = vrot.lane.b32.xlu0 %v963, 17
  %v980 = vpop.permute.xlu0 %979
  %981 = vrot.lane.b32.xlu0 %v967, 17
  %v982 = vpop.permute.xlu0 %981
  %983 = vrot.lane.b32.xlu0 %v964, 17
  %v984 = vpop.permute.xlu0 %983
  %985 = vrot.lane.b32.xlu0 %v968, 17
  %v986 = vpop.permute.xlu0 %985
  %v987 = vsel %vm74, %v980, %v984
  %v988 = vsel %vm74, %v982, %v986
  %v989 = vsel %vm74, %v976, %v980
  %v990 = vsel %vm74, %v978, %v982
  %v991 = vsel %vm74, %v972, %v976
  %v992 = vsel %vm74, %v974, %v978
  %v993 = vsel %vm74, %v984, %v972
  %v994 = vsel %vm74, %v986, %v974
  %v995 = vmul.f32 %v993, %v80
  %v996 = vmul.f32 %v991, %v81
  %v997 = vmul.f32 %v989, %v82
  %v998 = vmul.f32 %v987, %v83
  %v999 = vmul.f32 %v994, %v80
  %v1000 = vmul.f32 %v992, %v81
  %v1001 = vmul.f32 %v990, %v82
  %v1002 = vmul.f32 %v988, %v83
  %1003 = vrot.lane.b32.xlu0 %v961, 16
  %v1004 = vpop.permute.xlu0 %1003
  %1005 = vrot.lane.b32.xlu0 %v965, 16
  %v1006 = vpop.permute.xlu0 %1005
  %1007 = vrot.lane.b32.xlu0 %v962, 16
  %v1008 = vpop.permute.xlu0 %1007
  %1009 = vrot.lane.b32.xlu0 %v966, 16
  %v1010 = vpop.permute.xlu0 %1009
  %1011 = vrot.lane.b32.xlu0 %v963, 16
  %v1012 = vpop.permute.xlu0 %1011
  %1013 = vrot.lane.b32.xlu0 %v967, 16
  %v1014 = vpop.permute.xlu0 %1013
  %1015 = vrot.lane.b32.xlu0 %v964, 16
  %v1016 = vpop.permute.xlu0 %1015
  %1017 = vrot.lane.b32.xlu0 %v968, 16
  %v1018 = vpop.permute.xlu0 %1017
  %v1019 = vsel %vm100, %v1012, %v1016
  %v1020 = vsel %vm100, %v1014, %v1018
  %v1021 = vsel %vm100, %v1008, %v1012
  %v1022 = vsel %vm100, %v1010, %v1014
  %v1023 = vsel %vm100, %v1004, %v1008
  %v1024 = vsel %vm100, %v1006, %v1010
  %v1025 = vsel %vm100, %v1016, %v1004
  %v1026 = vsel %vm100, %v1018, %v1006
  %v1027 = vmul.f32 %v1025, %v106
  %v1028 = vmul.f32 %v1023, %v107
  %v1029 = vmul.f32 %v1021, %v108
  %v1030 = vmul.f32 %v1019, %v109
  %v1031 = vmul.f32 %v1026, %v106
  %v1032 = vmul.f32 %v1024, %v107
  %v1033 = vmul.f32 %v1022, %v108
  %v1034 = vmul.f32 %v1020, %v109
  %1035 = vrot.lane.b32.xlu0 %v961, 15
  %v1036 = vpop.permute.xlu0 %1035
  %1037 = vrot.lane.b32.xlu0 %v965, 15
  %v1038 = vpop.permute.xlu0 %1037
  %1039 = vrot.lane.b32.xlu0 %v962, 15
  %v1040 = vpop.permute.xlu0 %1039
  %1041 = vrot.lane.b32.xlu0 %v966, 15
  %v1042 = vpop.permute.xlu0 %1041
  %1043 = vrot.lane.b32.xlu0 %v963, 15
  %v1044 = vpop.permute.xlu0 %1043
  %1045 = vrot.lane.b32.xlu0 %v967, 15
  %v1046 = vpop.permute.xlu0 %1045
  %1047 = vrot.lane.b32.xlu0 %v964, 15
  %v1048 = vpop.permute.xlu0 %1047
  %1049 = vrot.lane.b32.xlu0 %v968, 15
  %v1050 = vpop.permute.xlu0 %1049
  %v1051 = vsel %vm126, %v1044, %v1048
  %v1052 = vsel %vm126, %v1046, %v1050
  %v1053 = vsel %vm126, %v1040, %v1044
  %v1054 = vsel %vm126, %v1042, %v1046
  %v1055 = vsel %vm126, %v1036, %v1040
  %v1056 = vsel %vm126, %v1038, %v1042
  %v1057 = vsel %vm126, %v1048, %v1036
  %v1058 = vsel %vm126, %v1050, %v1038
  %v1059 = vmul.f32 %v1057, %v132
  %v1060 = vmul.f32 %v1055, %v133
  %v1061 = vmul.f32 %v1053, %v134
  %v1062 = vmul.f32 %v1051, %v135
  %v1063 = vmul.f32 %v1058, %v132
  %v1064 = vmul.f32 %v1056, %v133
  %v1065 = vmul.f32 %v1054, %v134
  %v1066 = vmul.f32 %v1052, %v135
  %1067 = vrot.lane.b32.xlu0 %v961, 1
  %v1068 = vpop.permute.xlu0 %1067
  %1069 = vrot.lane.b32.xlu0 %v965, 1
  %v1070 = vpop.permute.xlu0 %1069
  %1071 = vrot.lane.b32.xlu0 %v962, 1
  %v1072 = vpop.permute.xlu0 %1071
  %1073 = vrot.lane.b32.xlu0 %v966, 1
  %v1074 = vpop.permute.xlu0 %1073
  %1075 = vrot.lane.b32.xlu0 %v963, 1
  %v1076 = vpop.permute.xlu0 %1075
  %1077 = vrot.lane.b32.xlu0 %v967, 1
  %v1078 = vpop.permute.xlu0 %1077
  %1079 = vrot.lane.b32.xlu0 %v964, 1
  %v1080 = vpop.permute.xlu0 %1079
  %1081 = vrot.lane.b32.xlu0 %v968, 1
  %v1082 = vpop.permute.xlu0 %1081
  %v1083 = vsel %vm152, %v1076, %v1080
  %v1084 = vsel %vm152, %v1078, %v1082
  %v1085 = vsel %vm152, %v1072, %v1076
  %v1086 = vsel %vm152, %v1074, %v1078
  %v1087 = vsel %vm152, %v1068, %v1072
  %v1088 = vsel %vm152, %v1070, %v1074
  %v1089 = vsel %vm152, %v1080, %v1068
  %v1090 = vsel %vm152, %v1082, %v1070
  %v1091 = vmul.f32 %v1089, %v158
  %v1092 = vmul.f32 %v1087, %v159
  %v1093 = vmul.f32 %v1085, %v160
  %v1094 = vmul.f32 %v1083, %v161
  %v1095 = vmul.f32 %v1090, %v158
  %v1096 = vmul.f32 %v1088, %v159
  %v1097 = vmul.f32 %v1086, %v160
  %v1098 = vmul.f32 %v1084, %v161
  %1099 = vrot.lane.b32.xlu0 %v961, 127
  %v1100 = vpop.permute.xlu0 %1099
  %1101 = vrot.lane.b32.xlu0 %v965, 127
  %v1102 = vpop.permute.xlu0 %1101
  %1103 = vrot.lane.b32.xlu0 %v962, 127
  %v1104 = vpop.permute.xlu0 %1103
  %1105 = vrot.lane.b32.xlu0 %v966, 127
  %v1106 = vpop.permute.xlu0 %1105
  %1107 = vrot.lane.b32.xlu0 %v963, 127
  %v1108 = vpop.permute.xlu0 %1107
  %1109 = vrot.lane.b32.xlu0 %v967, 127
  %v1110 = vpop.permute.xlu0 %1109
  %1111 = vrot.lane.b32.xlu0 %v964, 127
  %v1112 = vpop.permute.xlu0 %1111
  %1113 = vrot.lane.b32.xlu0 %v968, 127
  %v1114 = vpop.permute.xlu0 %1113
  %v1115 = vsel %vm178, %v1108, %v1112
  %v1116 = vsel %vm178, %v1110, %v1114
  %v1117 = vsel %vm178, %v1104, %v1108
  %v1118 = vsel %vm178, %v1106, %v1110
  %v1119 = vsel %vm178, %v1100, %v1104
  %v1120 = vsel %vm178, %v1102, %v1106
  %v1121 = vsel %vm178, %v1112, %v1100
  %v1122 = vsel %vm178, %v1114, %v1102
  %v1123 = vmul.f32 %v1119, %v184
  %v1124 = vmul.f32 %v1117, %v185
  %v1125 = vmul.f32 %v1115, %v186
  %v1126 = vmul.f32 %v1121, %v187
  %v1127 = vmul.f32 %v1120, %v184
  %v1128 = vmul.f32 %v1118, %v185
  %v1129 = vmul.f32 %v1116, %v186
  %v1130 = vmul.f32 %v1122, %v187
  %1131 = vrot.lane.b32.xlu0 %v961, 113
  %v1132 = vpop.permute.xlu0 %1131
  %1133 = vrot.lane.b32.xlu0 %v965, 113
  %v1134 = vpop.permute.xlu0 %1133
  %1135 = vrot.lane.b32.xlu0 %v962, 113
  %v1136 = vpop.permute.xlu0 %1135
  %1137 = vrot.lane.b32.xlu0 %v966, 113
  %v1138 = vpop.permute.xlu0 %1137
  %1139 = vrot.lane.b32.xlu0 %v963, 113
  %v1140 = vpop.permute.xlu0 %1139
  %1141 = vrot.lane.b32.xlu0 %v967, 113
  %v1142 = vpop.permute.xlu0 %1141
  %1143 = vrot.lane.b32.xlu0 %v964, 113
  %v1144 = vpop.permute.xlu0 %1143
  %1145 = vrot.lane.b32.xlu0 %v968, 113
  %v1146 = vpop.permute.xlu0 %1145
  %v1147 = vsel %vm204, %v1140, %v1144
  %v1148 = vsel %vm204, %v1142, %v1146
  %v1149 = vsel %vm204, %v1136, %v1140
  %v1150 = vsel %vm204, %v1138, %v1142
  %v1151 = vsel %vm204, %v1132, %v1136
  %v1152 = vsel %vm204, %v1134, %v1138
  %v1153 = vsel %vm204, %v1144, %v1132
  %v1154 = vsel %vm204, %v1146, %v1134
  %v1155 = vmul.f32 %v1151, %v210
  %v1156 = vmul.f32 %v1149, %v211
  %v1157 = vmul.f32 %v1147, %v212
  %v1158 = vmul.f32 %v1153, %v213
  %v1159 = vmul.f32 %v1152, %v210
  %v1160 = vmul.f32 %v1150, %v211
  %v1161 = vmul.f32 %v1148, %v212
  %v1162 = vmul.f32 %v1154, %v213
  %1163 = vrot.lane.b32.xlu0 %v961, 112
  %v1164 = vpop.permute.xlu0 %1163
  %1165 = vrot.lane.b32.xlu0 %v965, 112
  %v1166 = vpop.permute.xlu0 %1165
  %1167 = vrot.lane.b32.xlu0 %v962, 112
  %v1168 = vpop.permute.xlu0 %1167
  %1169 = vrot.lane.b32.xlu0 %v966, 112
  %v1170 = vpop.permute.xlu0 %1169
  %1171 = vrot.lane.b32.xlu0 %v963, 112
  %v1172 = vpop.permute.xlu0 %1171
  %1173 = vrot.lane.b32.xlu0 %v967, 112
  %v1174 = vpop.permute.xlu0 %1173
  %1175 = vrot.lane.b32.xlu0 %v964, 112
  %v1176 = vpop.permute.xlu0 %1175
  %1177 = vrot.lane.b32.xlu0 %v968, 112
  %v1178 = vpop.permute.xlu0 %1177
  %v1179 = vsel %vm230, %v1172, %v1176
  %v1180 = vsel %vm230, %v1174, %v1178
  %v1181 = vsel %vm230, %v1168, %v1172
  %v1182 = vsel %vm230, %v1170, %v1174
  %v1183 = vsel %vm230, %v1164, %v1168
  %v1184 = vsel %vm230, %v1166, %v1170
  %v1185 = vsel %vm230, %v1176, %v1164
  %v1186 = vsel %vm230, %v1178, %v1166
  %v1187 = vmul.f32 %v1183, %v236
  %v1188 = vmul.f32 %v1181, %v237
  %v1189 = vmul.f32 %v1179, %v238
  %v1190 = vmul.f32 %v1185, %v239
  %v1191 = vmul.f32 %v1184, %v236
  %v1192 = vmul.f32 %v1182, %v237
  %v1193 = vmul.f32 %v1180, %v238
  %v1194 = vmul.f32 %v1186, %v239
  %1195 = vrot.lane.b32.xlu0 %v961, 111
  %v1196 = vpop.permute.xlu0 %1195
  %1197 = vrot.lane.b32.xlu0 %v965, 111
  %v1198 = vpop.permute.xlu0 %1197
  %1199 = vrot.lane.b32.xlu0 %v962, 111
  %v1200 = vpop.permute.xlu0 %1199
  %1201 = vrot.lane.b32.xlu0 %v966, 111
  %v1202 = vpop.permute.xlu0 %1201
  %1203 = vrot.lane.b32.xlu0 %v963, 111
  %v1204 = vpop.permute.xlu0 %1203
  %1205 = vrot.lane.b32.xlu0 %v967, 111
  %v1206 = vpop.permute.xlu0 %1205
  %1207 = vrot.lane.b32.xlu0 %v964, 111
  %v1208 = vpop.permute.xlu0 %1207
  %1209 = vrot.lane.b32.xlu0 %v968, 111
  %v1210 = vpop.permute.xlu0 %1209
  %v1211 = vsel %vm256, %v1204, %v1208
  %v1212 = vsel %vm256, %v1206, %v1210
  %v1213 = vsel %vm256, %v1200, %v1204
  %v1214 = vsel %vm256, %v1202, %v1206
  %v1215 = vsel %vm256, %v1196, %v1200
  %v1216 = vsel %vm256, %v1198, %v1202
  %v1217 = vsel %vm256, %v1208, %v1196
  %v1218 = vsel %vm256, %v1210, %v1198
  %v1219 = vmul.f32 %v1215, %v262
  %v1220 = vmul.f32 %v1213, %v263
  %v1221 = vmul.f32 %v1211, %v264
  %v1222 = vmul.f32 %v1217, %v265
  %v1223 = vmul.f32 %v1216, %v262
  %v1224 = vmul.f32 %v1214, %v263
  %v1225 = vmul.f32 %v1212, %v264
  %v1226 = vmul.f32 %v1218, %v265
  %v1227 = vpack.c.bf16 %v999, %v995
  %v1228 = vpack.c.bf16 %v1000, %v996
  %v1229 = vpack.c.bf16 %v1001, %v997
  %v1230 = vpack.c.bf16 %v1002, %v998
  %v1231 = vpack.c.bf16 %v1031, %v1027
  %v1232 = vpack.c.bf16 %v1032, %v1028
  %v1233 = vpack.c.bf16 %v1033, %v1029
  %v1234 = vpack.c.bf16 %v1034, %v1030
  %v1235 = vpack.c.bf16 %v1063, %v1059
  %v1236 = vpack.c.bf16 %v1064, %v1060
  %v1237 = vpack.c.bf16 %v1065, %v1061
  %v1238 = vpack.c.bf16 %v1066, %v1062
  %v1239 = vpack.c.bf16 %v1095, %v1091
  %v1240 = vpack.c.bf16 %v1096, %v1092
  %v1241 = vpack.c.bf16 %v1097, %v1093
  %v1242 = vpack.c.bf16 %v1098, %v1094
  %v1243 = vpack.c.bf16 %v965, %v961
  %v1244 = vpack.c.bf16 %v966, %v962
  %v1245 = vpack.c.bf16 %v967, %v963
  %v1246 = vpack.c.bf16 %v968, %v964
  %v1247 = vpack.c.bf16 %v1127, %v1123
  %v1248 = vpack.c.bf16 %v1128, %v1124
  %v1249 = vpack.c.bf16 %v1129, %v1125
  %v1250 = vpack.c.bf16 %v1130, %v1126
  %v1251 = vpack.c.bf16 %v1159, %v1155
  %v1252 = vpack.c.bf16 %v1160, %v1156
  %v1253 = vpack.c.bf16 %v1161, %v1157
  %v1254 = vpack.c.bf16 %v1162, %v1158
  %v1255 = vpack.c.bf16 %v1191, %v1187
  %v1256 = vpack.c.bf16 %v1192, %v1188
  %v1257 = vpack.c.bf16 %v1193, %v1189
  %v1258 = vpack.c.bf16 %v1194, %v1190
  %v1259 = vpack.c.bf16 %v1223, %v1219
  %v1260 = vpack.c.bf16 %v1224, %v1220
  %v1261 = vpack.c.bf16 %v1225, %v1221
  %v1262 = vpack.c.bf16 %v1226, %v1222
  %v1265 = vunpack.c.l.b16 %v969
  %v1266 = vunpack.c.h.b16 %v969
  %v1267 = vunpack.c.l.b16 %v970
  %v1268 = vunpack.c.h.b16 %v970
  %v1269 = vpack.c.b16 %v1267, %v1265
  %v1270 = vpack.c.b16 %v1268, %v1266
  %v1273 = vsel %vm743, %v1270, 0
  %1275 = vmatpush.bf16.msra.mxu0 %v1255
  %1276 = vmatpush.bf16.msra.mxu0 %v1251
  %1277 = vmatpush.bf16.msra.mxu0 %v1247
  %1278 = vmatpush.bf16.msra.mxu0 %v1243
  %1279 = vmatpush.bf16.msra.mxu0 %v1239
  %1280 = vmatpush.bf16.msra.mxu0 %v1235
  %1281 = vmatpush.bf16.msra.mxu0 %v1231
  %1282 = vmatpush.bf16.msra.mxu0 %v1227
  %1283 = vmatmul.bf16.gmra.mxu0 %v1269
  %v1284 = vpop.f32.mrf.mxu0
  %v1285 = vadd.f32 0.0, %v1284
  %v1286 = vpop.f32.mrf.mxu0
  %v1287 = vadd.f32 0.0, %v1286
  %1288 = vdwg.mxu0
  %1289 = vmatpush.bf16.msra.mxu0 0
  %1290 = vmatpush.bf16.msra.mxu0 0
  %1291 = vmatpush.bf16.msra.mxu0 0
  %1292 = vmatpush.bf16.msra.mxu0 0
  %1293 = vmatpush.bf16.msra.mxu0 0
  %1294 = vmatpush.bf16.msra.mxu0 0
  %1295 = vmatpush.bf16.msra.mxu0 0
  %1296 = vmatpush.bf16.msra.mxu0 %v1259
  %1297 = vmatmul.bf16.gmra.mxu0 %v1273
  %v1298 = vpop.f32.mrf.mxu0
  %v1299 = vadd.f32 %v1285, %v1298
  %v1300 = vpop.f32.mrf.mxu0
  %v1301 = vadd.f32 %v1287, %v1300
  %1302 = vdwg.mxu0
  %1303 = vmatpush.bf16.msra.mxu0 %v1256
  %1304 = vmatpush.bf16.msra.mxu0 %v1252
  %1305 = vmatpush.bf16.msra.mxu0 %v1248
  %1306 = vmatpush.bf16.msra.mxu0 %v1244
  %1307 = vmatpush.bf16.msra.mxu0 %v1240
  %1308 = vmatpush.bf16.msra.mxu0 %v1236
  %1309 = vmatpush.bf16.msra.mxu0 %v1232
  %1310 = vmatpush.bf16.msra.mxu0 %v1228
  %1311 = vmatmul.bf16.gmra.mxu0 %v1269
  %v1312 = vpop.f32.mrf.mxu0
  %v1313 = vadd.f32 0.0, %v1312
  %v1314 = vpop.f32.mrf.mxu0
  %v1315 = vadd.f32 0.0, %v1314
  %1316 = vdwg.mxu0
  %1317 = vmatpush.bf16.msra.mxu0 0
  %1318 = vmatpush.bf16.msra.mxu0 0
  %1319 = vmatpush.bf16.msra.mxu0 0
  %1320 = vmatpush.bf16.msra.mxu0 0
  %1321 = vmatpush.bf16.msra.mxu0 0
  %1322 = vmatpush.bf16.msra.mxu0 0
  %1323 = vmatpush.bf16.msra.mxu0 0
  %1324 = vmatpush.bf16.msra.mxu0 %v1260
  %1325 = vmatmul.bf16.gmra.mxu0 %v1273
  %v1326 = vpop.f32.mrf.mxu0
  %v1327 = vadd.f32 %v1313, %v1326
  %v1328 = vpop.f32.mrf.mxu0
  %v1329 = vadd.f32 %v1315, %v1328
  %1330 = vdwg.mxu0
  %1331 = vmatpush.bf16.msra.mxu0 %v1257
  %1332 = vmatpush.bf16.msra.mxu0 %v1253
  %1333 = vmatpush.bf16.msra.mxu0 %v1249
  %1334 = vmatpush.bf16.msra.mxu0 %v1245
  %1335 = vmatpush.bf16.msra.mxu0 %v1241
  %1336 = vmatpush.bf16.msra.mxu0 %v1237
  %1337 = vmatpush.bf16.msra.mxu0 %v1233
  %1338 = vmatpush.bf16.msra.mxu0 %v1229
  %1339 = vmatmul.bf16.gmra.mxu0 %v1269
  %v1340 = vpop.f32.mrf.mxu0
  %v1341 = vadd.f32 0.0, %v1340
  %v1342 = vpop.f32.mrf.mxu0
  %v1343 = vadd.f32 0.0, %v1342
  %1344 = vdwg.mxu0
  %1345 = vmatpush.bf16.msra.mxu0 0
  %1346 = vmatpush.bf16.msra.mxu0 0
  %1347 = vmatpush.bf16.msra.mxu0 0
  %1348 = vmatpush.bf16.msra.mxu0 0
  %1349 = vmatpush.bf16.msra.mxu0 0
  %1350 = vmatpush.bf16.msra.mxu0 0
  %1351 = vmatpush.bf16.msra.mxu0 0
  %1352 = vmatpush.bf16.msra.mxu0 %v1261
  %1353 = vmatmul.bf16.gmra.mxu0 %v1273
  %v1354 = vpop.f32.mrf.mxu0
  %v1355 = vadd.f32 %v1341, %v1354
  %v1356 = vpop.f32.mrf.mxu0
  %v1357 = vadd.f32 %v1343, %v1356
  %1358 = vdwg.mxu0
  %1359 = vmatpush.bf16.msra.mxu0 %v1258
  %1360 = vmatpush.bf16.msra.mxu0 %v1254
  %1361 = vmatpush.bf16.msra.mxu0 %v1250
  %1362 = vmatpush.bf16.msra.mxu0 %v1246
  %1363 = vmatpush.bf16.msra.mxu0 %v1242
  %1364 = vmatpush.bf16.msra.mxu0 %v1238
  %1365 = vmatpush.bf16.msra.mxu0 %v1234
  %1366 = vmatpush.bf16.msra.mxu0 %v1230
  %1367 = vmatmul.bf16.gmra.mxu0 %v1269
  %v1368 = vpop.f32.mrf.mxu0
  %v1369 = vadd.f32 0.0, %v1368
  %v1370 = vpop.f32.mrf.mxu0
  %v1371 = vadd.f32 0.0, %v1370
  %1372 = vdwg.mxu0
  %1373 = vmatpush.bf16.msra.mxu0 0
  %1374 = vmatpush.bf16.msra.mxu0 0
  %1375 = vmatpush.bf16.msra.mxu0 0
  %1376 = vmatpush.bf16.msra.mxu0 0
  %1377 = vmatpush.bf16.msra.mxu0 0
  %1378 = vmatpush.bf16.msra.mxu0 0
  %1379 = vmatpush.bf16.msra.mxu0 0
  %1380 = vmatpush.bf16.msra.mxu0 %v1262
  %1381 = vmatmul.bf16.gmra.mxu0 %v1273
  %v1382 = vpop.f32.mrf.mxu0
  %v1383 = vadd.f32 %v1369, %v1382
  %v1384 = vpop.f32.mrf.mxu0
  %v1385 = vadd.f32 %v1371, %v1384
  %1386 = vdwg.mxu0
  %v1387 = vmax.f32 %v1299, 0.0
  %v1388 = vmax.f32 %v1327, 0.0
  %v1389 = vmax.f32 %v1355, 0.0
  %v1390 = vmax.f32 %v1383, 0.0
  %v1391 = vmax.f32 %v1301, 0.0
  %v1392 = vmax.f32 %v1329, 0.0
  %v1393 = vmax.f32 %v1357, 0.0
  %v1394 = vmax.f32 %v1385, 0.0
  %v1395 = vld [vmem:[%s9] sm:$0xff]
  %v1396 = vld [vmem:[%s9 + $0x8] sm:$0xff]
  %v1397 = vld [vmem:[%s7] sm:$0xf]
  %v1398 = vld [vmem:[%s7 + $0x4] sm:$0xf]
  %v1399 = vpack.c.bf16 %v949, %v945
  %v1400 = vpack.c.bf16 %v950, %v946
  %v1401 = vpack.c.bf16 %v951, %v947
  %v1402 = vpack.c.bf16 %v952, %v948
  %v1403 = vpack.c.bf16 %v957, %v953
  %v1404 = vpack.c.bf16 %v958, %v954
  %v1405 = vpack.c.bf16 %v959, %v955
  %v1406 = vpack.c.bf16 %v960, %v956
  %v1407 = vld [vmem:[%s8] sm:$0xf]
  %v1408 = vld [vmem:[%s8 + $0x4] sm:$0xf]
  %v1409 = vpack.c.bf16 %v1391, %v1387
  %v1410 = vpack.c.bf16 %v1392, %v1388
  %v1411 = vpack.c.bf16 %v1393, %v1389
  %v1412 = vpack.c.bf16 %v1394, %v1390
  %v1415 = vunpack.c.l.b16 %v1407
  %v1416 = vunpack.c.l.b16 %v1408
  %v1417 = vpack.c.b16 %v1416, %v1415
  %v1419 = vsel %vm743, %v1417, 0
  %1421 = vmatpush.bf16.msra.mxu0 0
  %1422 = vmatpush.bf16.msra.mxu0 0
  %1423 = vmatpush.bf16.msra.mxu0 0
  %1424 = vmatpush.bf16.msra.mxu0 0
  %1425 = vmatpush.bf16.msra.mxu0 0
  %1426 = vmatpush.bf16.msra.mxu0 0
  %1427 = vmatpush.bf16.msra.mxu0 0
  %1428 = vmatpush.bf16.msra.mxu0 %v1409
  %1429 = vmatmul.bf16.gmra.mxu0 %v1419
  %v1430 = vpop.f32.mrf.mxu0
  %v1431 = vadd.f32 0.0, %v1430
  %v1432 = vpop.f32.mrf.mxu0
  %v1433 = vadd.f32 0.0, %v1432
  %1434 = vdwg.mxu0
  %1435 = vmatpush.bf16.msra.mxu0 0
  %1436 = vmatpush.bf16.msra.mxu0 0
  %1437 = vmatpush.bf16.msra.mxu0 0
  %1438 = vmatpush.bf16.msra.mxu0 0
  %1439 = vmatpush.bf16.msra.mxu0 0
  %1440 = vmatpush.bf16.msra.mxu0 0
  %1441 = vmatpush.bf16.msra.mxu0 0
  %1442 = vmatpush.bf16.msra.mxu0 %v1410
  %1443 = vmatmul.bf16.gmra.mxu0 %v1419
  %v1444 = vpop.f32.mrf.mxu0
  %v1445 = vadd.f32 0.0, %v1444
  %v1446 = vpop.f32.mrf.mxu0
  %v1447 = vadd.f32 0.0, %v1446
  %1448 = vdwg.mxu0
  %1449 = vmatpush.bf16.msra.mxu0 0
  %1450 = vmatpush.bf16.msra.mxu0 0
  %1451 = vmatpush.bf16.msra.mxu0 0
  %1452 = vmatpush.bf16.msra.mxu0 0
  %1453 = vmatpush.bf16.msra.mxu0 0
  %1454 = vmatpush.bf16.msra.mxu0 0
  %1455 = vmatpush.bf16.msra.mxu0 0
  %1456 = vmatpush.bf16.msra.mxu0 %v1411
  %1457 = vmatmul.bf16.gmra.mxu0 %v1419
  %v1458 = vpop.f32.mrf.mxu0
  %v1459 = vadd.f32 0.0, %v1458
  %v1460 = vpop.f32.mrf.mxu0
  %v1461 = vadd.f32 0.0, %v1460
  %1462 = vdwg.mxu0
  %1463 = vmatpush.bf16.msra.mxu0 0
  %1464 = vmatpush.bf16.msra.mxu0 0
  %1465 = vmatpush.bf16.msra.mxu0 0
  %1466 = vmatpush.bf16.msra.mxu0 0
  %1467 = vmatpush.bf16.msra.mxu0 0
  %1468 = vmatpush.bf16.msra.mxu0 0
  %1469 = vmatpush.bf16.msra.mxu0 0
  %1470 = vmatpush.bf16.msra.mxu0 %v1412
  %1471 = vmatmul.bf16.gmra.mxu0 %v1419
  %v1472 = vpop.f32.mrf.mxu0
  %v1473 = vadd.f32 0.0, %v1472
  %v1474 = vpop.f32.mrf.mxu0
  %v1475 = vadd.f32 0.0, %v1474
  %1476 = vdwg.mxu0
  %v1479 = vunpack.c.l.b16 %v1397
  %v1480 = vunpack.c.l.b16 %v1398
  %v1481 = vpack.c.b16 %v1480, %v1479
  %vm1482 = vcmask 261120
  %v1484 = vsel %vm1482, %v1481, 0
  %1486 = vmatpush.bf16.msra.mxu0 0
  %1487 = vmatpush.bf16.msra.mxu0 0
  %1488 = vmatpush.bf16.msra.mxu0 0
  %1489 = vmatpush.bf16.msra.mxu0 0
  %1490 = vmatpush.bf16.msra.mxu0 0
  %1491 = vmatpush.bf16.msra.mxu0 0
  %1492 = vmatpush.bf16.msra.mxu0 %v1403
  %1493 = vmatpush.bf16.msra.mxu0 %v1399
  %1494 = vmatmul.bf16.gmra.mxu0 %v1484
  %v1495 = vpop.f32.mrf.mxu0
  %v1496 = vadd.f32 %v1431, %v1495
  %v1497 = vpop.f32.mrf.mxu0
  %v1498 = vadd.f32 %v1433, %v1497
  %1499 = vdwg.mxu0
  %1500 = vmatpush.bf16.msra.mxu0 0
  %1501 = vmatpush.bf16.msra.mxu0 0
  %1502 = vmatpush.bf16.msra.mxu0 0
  %1503 = vmatpush.bf16.msra.mxu0 0
  %1504 = vmatpush.bf16.msra.mxu0 0
  %1505 = vmatpush.bf16.msra.mxu0 0
  %1506 = vmatpush.bf16.msra.mxu0 %v1404
  %1507 = vmatpush.bf16.msra.mxu0 %v1400
  %1508 = vmatmul.bf16.gmra.mxu0 %v1484
  %v1509 = vpop.f32.mrf.mxu0
  %v1510 = vadd.f32 %v1445, %v1509
  %v1511 = vpop.f32.mrf.mxu0
  %v1512 = vadd.f32 %v1447, %v1511
  %1513 = vdwg.mxu0
  %1514 = vmatpush.bf16.msra.mxu0 0
  %1515 = vmatpush.bf16.msra.mxu0 0
  %1516 = vmatpush.bf16.msra.mxu0 0
  %1517 = vmatpush.bf16.msra.mxu0 0
  %1518 = vmatpush.bf16.msra.mxu0 0
  %1519 = vmatpush.bf16.msra.mxu0 0
  %1520 = vmatpush.bf16.msra.mxu0 %v1405
  %1521 = vmatpush.bf16.msra.mxu0 %v1401
  %1522 = vmatmul.bf16.gmra.mxu0 %v1484
  %v1523 = vpop.f32.mrf.mxu0
  %v1524 = vadd.f32 %v1459, %v1523
  %v1525 = vpop.f32.mrf.mxu0
  %v1526 = vadd.f32 %v1461, %v1525
  %1527 = vdwg.mxu0
  %1528 = vmatpush.bf16.msra.mxu0 0
  %1529 = vmatpush.bf16.msra.mxu0 0
  %1530 = vmatpush.bf16.msra.mxu0 0
  %1531 = vmatpush.bf16.msra.mxu0 0
  %1532 = vmatpush.bf16.msra.mxu0 0
  %1533 = vmatpush.bf16.msra.mxu0 0
  %1534 = vmatpush.bf16.msra.mxu0 %v1406
  %1535 = vmatpush.bf16.msra.mxu0 %v1402
  %1536 = vmatmul.bf16.gmra.mxu0 %v1484
  %v1537 = vpop.f32.mrf.mxu0
  %v1538 = vadd.f32 %v1473, %v1537
  %v1539 = vpop.f32.mrf.mxu0
  %v1540 = vadd.f32 %v1475, %v1539
  %1541 = vdwg.mxu0
  %1543 = vset.pattern.permute.xlu0 0
  %1544 = vperm.xlu0 %1543, %v1395
  %v1545 = vpop.permute.xlu0 %1544
  %1548 = vset.pattern.permute.xlu0 0
  %1549 = vperm.xlu0 %1548, %v1396
  %v1550 = vpop.permute.xlu0 %1549
  %v1552 = vmul.f32 %v1545, %v1496
  %v1553 = vmul.f32 %v1545, %v1510
  %v1554 = vmul.f32 %v1545, %v1524
  %v1555 = vmul.f32 %v1545, %v1538
  %v1556 = vmul.f32 %v1550, %v1498
  %v1557 = vmul.f32 %v1550, %v1512
  %v1558 = vmul.f32 %v1550, %v1526
  %v1559 = vmul.f32 %v1550, %v1540
  %v1560 = vld [vmem:[%s10] sm:$0xff]
  %v1561 = vld [vmem:[%s10 + $0x8] sm:$0xff]
  %1563 = vset.pattern.permute.xlu0 0
  %1564 = vperm.xlu0 %1563, %v1560
  %v1565 = vpop.permute.xlu0 %1564
  %1568 = vset.pattern.permute.xlu0 0
  %1569 = vperm.xlu0 %1568, %v1561
  %v1570 = vpop.permute.xlu0 %1569
  %v1572 = vadd.f32 %v1552, %v1565
  %v1573 = vadd.f32 %v1553, %v1565
  %v1574 = vadd.f32 %v1554, %v1565
  %v1575 = vadd.f32 %v1555, %v1565
  %v1576 = vadd.f32 %v1556, %v1570
  %v1577 = vadd.f32 %v1557, %v1570
  %v1578 = vadd.f32 %v1558, %v1570
  %v1579 = vadd.f32 %v1559, %v1570
  %v1580 = vmax.f32 %v1572, 0.0
  %v1581 = vmax.f32 %v1573, 0.0
  %v1582 = vmax.f32 %v1574, 0.0
  %v1583 = vmax.f32 %v1575, 0.0
  %v1584 = vmax.f32 %v1576, 0.0
  %v1585 = vmax.f32 %v1577, 0.0
  %v1586 = vmax.f32 %v1578, 0.0
  %v1587 = vmax.f32 %v1579, 0.0
  %1588 = vst [vmem:[%s12] sm:$0xff] %v1580
  %1589 = vst [vmem:[%s12 + $0x8] sm:$0xff] %v1581
  %1590 = vst [vmem:[%s12 + $0x10] sm:$0xff] %v1582
  %1591 = vst [vmem:[%s12 + $0x18] sm:$0xff] %v1583
  %1592 = vst [vmem:[%s12 + $0x20] sm:$0xff] %v1584
  %1593 = vst [vmem:[%s12 + $0x28] sm:$0xff] %v1585
  %1594 = vst [vmem:[%s12 + $0x30] sm:$0xff] %v1586
  %1595 = vst [vmem:[%s12 + $0x38] sm:$0xff] %v1587
  %v1596 = vadd.f32 %v1580, %v410
  %v1597 = vadd.f32 %v1581, %v411
  %v1598 = vadd.f32 %v1582, %v412
  %v1599 = vadd.f32 %v1583, %v413
  %v1600 = vadd.f32 %v1584, %v414
  %v1601 = vadd.f32 %v1585, %v415
  %v1602 = vadd.f32 %v1586, %v416
  %v1603 = vadd.f32 %v1587, %v417
  %1604 = vst [vmem:[%s11] sm:$0xff] %v1596
  %1605 = vst [vmem:[%s11 + $0x8] sm:$0xff] %v1597
  %1606 = vst [vmem:[%s11 + $0x10] sm:$0xff] %v1598
  %1607 = vst [vmem:[%s11 + $0x18] sm:$0xff] %v1599
  %1608 = vst [vmem:[%s11 + $0x20] sm:$0xff] %v1600
  %1609 = vst [vmem:[%s11 + $0x28] sm:$0xff] %v1601
  %1610 = vst [vmem:[%s11 + $0x30] sm:$0xff] %v1602
  %1611 = vst [vmem:[%s11 + $0x38] sm:$0xff] %v1603
  // Predicated region
  $region46: #{mff_encoder.1} parent=0 // pred_check
    _
  $region47: #{mff_encoder.1} parent=0 // pred_check_branch
    %1613 = sbr.rel (0) target = $region49
  $region48: #{mff_encoder.1} parent=0 // pred_region
    _
  $region49: #{mff_encoder.1} parent=0 // pred_fallthru
    _
  // Predicated region
  $region50: #{mff_encoder.1} parent=0 // pred_check
    _
  $region51: #{mff_encoder.1} parent=0 // pred_check_branch
    %1615 = sbr.rel (0) target = $region53
  $region52: #{mff_encoder.1} parent=0 // pred_region
    _
  $region53: #{mff_encoder.1} parent=0 // pred_fallthru
    _
  // Predicated region
  $region54: #{mff_encoder.1} parent=0 // pred_check
    _
  $region55: #{mff_encoder.1} parent=0 // pred_check_branch
    %1617 = sbr.rel (0) target = $region57
  $region56: #{mff_encoder.1} parent=0 // pred_region
    _
  $region57: #{mff_encoder.1} parent=0 // pred_fallthru
    _
  // Predicated region
  $region58: #{mff_encoder.1} parent=0 // pred_check
    _
  $region59: #{mff_encoder.1} parent=0 // pred_check_branch
    %1619 = sbr.rel (0) target = $region61
  $region60: #{mff_encoder.1} parent=0 // pred_region
    _
  $region61: #{mff_encoder.1} parent=0 // pred_fallthru
    _

</llo_original>
